<compile_context>
chip_gen: v7x
topology: tpu7x:2x2x1
jax: 0.10.0
libtpu: 0.0.40
codegen_flags: <defaults>
</compile_context>

<pallas_src>
import functools

import numpy as np

import jax
import jax.numpy as jnp
from jax import lax
from jax.experimental import pallas as pl
from jax.experimental.pallas import tpu as pltpu


_BN_EPS = 1e-5
_LRELU_SLOPE = 0.2


# ---------------------------------------------------------------------------
# Fused Pallas kernel
# ---------------------------------------------------------------------------
def _full_spec(shape):
    shape = tuple(int(d) for d in shape)
    return pl.BlockSpec(shape, lambda i: (0,) * len(shape))


def _make_disc_kernel(n, h0, chans):
    """Build the fused forward kernel for a static (batch, spatial, channels)."""
    hs = [h0 // (2 ** i) for i in range(5)]      # per-layer input heights + final

    def kernel(x_ref,
               b1, g1, e1, b2, g2, e2, b3, g3, e3, b4, g4, e4,
               wfc_ref, bfc_ref, y_ref,
               o_ref,
               buf2, buf3, buf4):
        b_refs = (b1, b2, b3, b4)
        g_refs = (g1, g2, g3, g4)
        e_refs = (e1, e2, e3, e4)
        bufs = (buf2, buf3, buf4)

        def conv_bn_lrelu(in_ref, b_ref, g_ref, e_ref, h_in, c_out):
            """Conv2d(4,2,1) + BatchNorm2d(train) + LeakyReLU(0.2).

            in_ref : (n*(h_in+2), W_in*C_in) f32 ref; rows=(n, padded h),
                     lanes=(w, c); rows 0 and h_in+1 of every image are zeros.
            b_ref  : (4*W_in*C_in, Wo*c_out) bf16 scattered tap weights (kh-major).
            returns (n*Ho, Wo*c_out) f32 value; rows=(n, oh), lanes=(ow, co).
            """
            ho = h_in // 2
            wo = ho                                       # square feature maps
            # Stride-2 / pad-1 gather along H via strided ref loads (no S matmuls).
            taps = []
            for kh in range(4):
                rows = [in_ref[pl.ds(i * (h_in + 2) + kh, ho, stride=2), :]
                        for i in range(n)]
                taps.append(rows[0] if n == 1 else jnp.concatenate(rows, axis=0))
            # One bf16 MXU matmul per layer: lanes = [kh0 | kh1 | kh2 | kh3].
            xk = jnp.concatenate(taps, axis=1).astype(jnp.bfloat16)
            acc = jnp.dot(xk, b_ref[...], preferred_element_type=jnp.float32)

            # BatchNorm2d (training batch stats, biased variance).  Per-channel
            # stats = fold of the per-lane sums over the Wo lane blocks, done
            # with roll+add steps (result is also broadcast back to every lane).
            lane = wo * c_out
            stats = jnp.concatenate(
                [jnp.sum(acc, axis=0, keepdims=True),
                 jnp.sum(acc * acc, axis=0, keepdims=True)], axis=0)  # (2, lane)
            if (wo & (wo - 1)) == 0:                      # power-of-two Wo
                step = c_out
                while step < lane:
                    stats = stats + pltpu.roll(stats, shift=step, axis=1)
                    step *= 2
            else:
                base = stats
                for j in range(1, wo):
                    stats = stats + pltpu.roll(base, shift=j * c_out, axis=1)
            inv_count = 1.0 / float(n * ho * wo)
            mean = stats[0:1, :] * inv_count
            ex2 = stats[1:2, :] * inv_count
            var = jnp.maximum(ex2 - mean * mean, 0.0)
            scale = g_ref[...] * lax.rsqrt(var + _BN_EPS)
            shift = e_ref[...] - mean * scale
            out = acc * scale + shift                     # folded BN FMA
            return jnp.where(out > 0, out, _LRELU_SLOPE * out)

        # ---- 4 x [conv -> BN -> LeakyReLU], chained through padded VMEM bufs
        in_ref = x_ref
        h = None
        for li in range(4):
            h = conv_bn_lrelu(in_ref, b_refs[li], g_refs[li], e_refs[li],
                              hs[li], chans[li + 1])
            if li < 3:
                buf = bufs[li]
                ho = hs[li + 1]
                buf[...] = jnp.zeros(buf.shape, buf.dtype)  # zero pad rows
                for i in range(n):
                    buf[pl.ds(i * (ho + 2) + 1, ho), :] = h[i * ho:(i + 1) * ho, :]
                in_ref = buf

        # ---- LinearConditionalMaskLogits head: single fused matmul ----
        h4 = hs[4]
        per_img = []
        for i in range(n):
            oh_rows = [h[i * h4 + oh:i * h4 + oh + 1, :] for oh in range(h4)]
            per_img.append(oh_rows[0] if h4 == 1
                           else jnp.concatenate(oh_rows, axis=1))
        feat = per_img[0] if n == 1 else jnp.concatenate(per_img, axis=0)
        logits = jnp.dot(feat.astype(jnp.bfloat16), wfc_ref[...],
                         preferred_element_type=jnp.float32) + bfc_ref[...]
        col = lax.broadcasted_iota(jnp.int32, logits.shape, 1)
        picked = jnp.where(col == y_ref[...], logits, 0.0)
        o_ref[...] = jnp.sum(picked, axis=1, keepdims=True)

    return kernel


# ---------------------------------------------------------------------------
# One-time (out of the per-step path) weight repacking
# ---------------------------------------------------------------------------
def _tap_weight_matrix(wt, w_in, cin_pad):
    """(Cout, Cin, 4, 4) conv weight -> (4*w_in*cin_pad, (w_in//2)*Cout) bf16
    scattered tap matrix (rows = (kh, iw, ci), cols = (ow, co))."""
    cout, cin = int(wt.shape[0]), int(wt.shape[1])
    wo = w_in // 2
    if cin_pad > cin:
        wt = jnp.concatenate(
            [wt, jnp.zeros((cout, cin_pad - cin, 4, 4), wt.dtype)], axis=1)
    p4 = np.zeros((4, w_in, wo), np.float32)          # stride-2 / pad-1 along W
    for kw in range(4):
        for ow in range(wo):
            iw = 2 * ow + kw - 1
            if 0 <= iw < w_in:
                p4[kw, iw, ow] = 1.0
    b = jnp.einsum('xio,uvhx->hivou', p4, wt)         # (kh, iw, ci, ow, co)
    return b.reshape(4 * w_in * cin_pad, wo * cout).astype(jnp.bfloat16)


def init_params(key, nc=3, ndf=8, num_k=4):
    """PyTorch-layout parameters (same shapes as the nn.Module)."""
    ks = list(jax.random.split(key, 10))

    def uinit(k_, shape, fan_in):
        bound = 1.0 / jnp.sqrt(jnp.float32(fan_in))
        return jax.random.uniform(k_, shape, jnp.float32, -bound, bound)

    chans = [nc, ndf, ndf * 2, ndf * 4, ndf * 8]
    params = {}
    for li in range(4):
        cin, cout = chans[li], chans[li + 1]
        fan_in = cin * 16
        params[f"conv{li + 1}_w"] = uinit(ks[2 * li], (cout, cin, 4, 4), fan_in)
        # Conv bias kept for parity with the PyTorch module, but it is exactly
        # cancelled by training-mode BN (batch mean), so the kernel drops it.
        params[f"conv{li + 1}_b"] = uinit(ks[2 * li + 1], (cout,), fan_in)
        params[f"bn{li + 1}_g"] = jnp.ones((cout,), jnp.float32)
        params[f"bn{li + 1}_b"] = jnp.zeros((cout,), jnp.float32)
    feat = ndf * 8 * 4
    params["fc_w"] = uinit(ks[8], (num_k, feat), feat)
    params["fc_b"] = uinit(ks[9], (num_k,), feat)
    return params


def prepare_params(params, *, image_size=32):
    """One-time repack of PyTorch-layout weights into the kernel layout.

    Call ONCE outside the training/eval step; the per-step forward consumes
    the prepacked operands directly (no per-call einsum / transpose / tile).
    """
    nc = int(params["conv1_w"].shape[1])
    c0 = ((nc + 3) // 4) * 4                          # lane-dense layer-1 input
    chans = [c0] + [int(params[f"conv{l}_w"].shape[0]) for l in (1, 2, 3, 4)]
    num_k = int(params["fc_w"].shape[0])
    hs = [image_size // (2 ** i) for i in range(5)]

    prep = {}
    for li in range(4):
        wo, cout = hs[li + 1], chans[li + 1]
        prep[f"b{li + 1}"] = _tap_weight_matrix(params[f"conv{li + 1}_w"],
                                                hs[li], chans[li])
        prep[f"g{li + 1}"] = jnp.tile(params[f"bn{li + 1}_g"], wo).reshape(1, wo * cout)
        prep[f"e{li + 1}"] = jnp.tile(params[f"bn{li + 1}_b"], wo).reshape(1, wo * cout)

    h4, w4, c4 = hs[4], hs[4], chans[4]
    wfc = params["fc_w"].reshape(num_k, c4, h4, w4)   # undo the NCHW flatten
    wfc = jnp.transpose(wfc, (2, 3, 1, 0)).reshape(h4 * w4 * c4, num_k)
    prep["wfc"] = wfc.astype(jnp.bfloat16)
    prep["bfc"] = params["fc_b"].reshape(1, num_k).astype(jnp.float32)
    return prep


# ---------------------------------------------------------------------------
# Forward
# ---------------------------------------------------------------------------
def discriminator_forward(prep, x, y, *, ndf=8, num_k=4):
    """Fused forward: x (N, C, H, W) f32, y (N,) int -> (N,) f32 masked logits."""
    n, nc, h0, w0 = x.shape
    assert h0 == w0 and h0 % 16 == 0, "square inputs with spatial % 16 == 0"
    c0 = ((nc + 3) // 4) * 4
    chans = [c0, ndf, ndf * 2, ndf * 4, ndf * 8]
    hs = [h0 // (2 ** i) for i in range(5)]

    # One layout transform at the kernel boundary: NCHW -> NHWC, zero-pad the
    # input channels to c0 and H by one row per side (the conv padding), then
    # flatten to the fused rows=(n,h) x lanes=(w,c) layout.
    xt = jnp.transpose(x, (0, 2, 3, 1))
    if c0 > nc:
        xt = jnp.pad(xt, ((0, 0), (0, 0), (0, 0), (0, c0 - nc)))
    xt = jnp.pad(xt, ((0, 0), (1, 1), (0, 0), (0, 0)))
    x2d = xt.reshape(n * (h0 + 2), w0 * c0)

    y2d = jnp.minimum(y, num_k - 1).astype(jnp.int32).reshape(n, 1)

    inputs = [x2d]
    for li in range(4):
        inputs += [prep[f"b{li + 1}"], prep[f"g{li + 1}"], prep[f"e{li + 1}"]]
    inputs += [prep["wfc"], prep["bfc"], y2d]

    # Padded VMEM row buffers holding the inputs of layers 2..4.
    scratch = [pltpu.VMEM((n * (hs[l] + 2), hs[l] * chans[l]), jnp.float32)
               for l in (1, 2, 3)]

    out = pl.pallas_call(
        _make_disc_kernel(n, h0, chans),
        out_shape=jax.ShapeDtypeStruct((n, 1), jnp.float32),
        grid=(1,),
        in_specs=[_full_spec(a.shape) for a in inputs],
        out_specs=_full_spec((n, 1)),
        scratch_shapes=scratch,
        compiler_params=pltpu.CompilerParams(
            dimension_semantics=("arbitrary",)),
    )(*inputs)
    # TODO(synk): for large batches, tile the grid over batch rows with
    # two-phase BN stats (partial sum/sumsq combined under pl.when) and mark
    # the axis "parallel" so both v7x TensorCores are used; at batch 2 a single
    # fused invocation is latency-optimal and sits well inside VMEM.
    return out.reshape(n)                             # 1-D, as asserted


# ---------------------------------------------------------------------------
if __name__ == "__main__":
    NUM_K, NC, NDF = 4, 3, 8
    key = jax.random.PRNGKey(0)
    kp, kx, ky = jax.random.split(key, 3)

    params = init_params(kp, nc=NC, ndf=NDF, num_k=NUM_K)
    prep = prepare_params(params, image_size=32)      # one-time weight repack

    # spatial 32 => flatten dim == ndf*8*4, matching the module's fc layer
    x = jax.random.normal(kx, (2, NC, 32, 32), jnp.float32)
    y = jax.random.randint(ky, (2,), 0, NUM_K + 2, jnp.int32)  # exercises clamp

    fwd = jax.jit(functools.partial(discriminator_forward, ndf=NDF, num_k=NUM_K))
    out = fwd(prep, x, y)
    jax.block_until_ready(out)
    assert out.shape == (2,) and out.dtype == jnp.float32
    print("KERNEL_OK")
</pallas_src>

<mosaic_0001>
module attributes {stable_mosaic.version = 11 : i64} {
  func.func @kernel(%arg0: i32, %arg1: memref<68x128xf32, #tpu.memory_space<vmem>>, %arg2: memref<512x128xbf16, #tpu.memory_space<vmem>>, %arg3: memref<1x128xf32, #tpu.memory_space<vmem>>, %arg4: memref<1x128xf32, #tpu.memory_space<vmem>>, %arg5: memref<512x128xbf16, #tpu.memory_space<vmem>>, %arg6: memref<1x128xf32, #tpu.memory_space<vmem>>, %arg7: memref<1x128xf32, #tpu.memory_space<vmem>>, %arg8: memref<512x128xbf16, #tpu.memory_space<vmem>>, %arg9: memref<1x128xf32, #tpu.memory_space<vmem>>, %arg10: memref<1x128xf32, #tpu.memory_space<vmem>>, %arg11: memref<512x128xbf16, #tpu.memory_space<vmem>>, %arg12: memref<1x128xf32, #tpu.memory_space<vmem>>, %arg13: memref<1x128xf32, #tpu.memory_space<vmem>>, %arg14: memref<256x4xbf16, #tpu.memory_space<vmem>>, %arg15: memref<1x4xf32, #tpu.memory_space<vmem>>, %arg16: memref<2x1xi32, #tpu.memory_space<vmem>>, %arg17: memref<2x1xf32, #tpu.memory_space<vmem>>, %arg18: memref<36x128xf32, #tpu.memory_space<vmem>>, %arg19: memref<20x128xf32, #tpu.memory_space<vmem>>, %arg20: memref<12x128xf32, #tpu.memory_space<vmem>>) attributes {dimension_semantics = [#tpu.dimension_semantics<arbitrary>], iteration_bounds = array<i64: 1>, scalar_prefetch = 0 : i64, scratch_operands = 3 : i64, tpu.core_type = #tpu.core_type<tc>, window_params = [{pipeline_mode = #tpu.pipeline_mode<synchronous>, transform_indices = @transform_0, window_bounds = array<i64: 68, 128>}, {pipeline_mode = #tpu.pipeline_mode<synchronous>, transform_indices = @transform_1, window_bounds = array<i64: 512, 128>}, {pipeline_mode = #tpu.pipeline_mode<synchronous>, transform_indices = @transform_2, window_bounds = array<i64: 1, 128>}, {pipeline_mode = #tpu.pipeline_mode<synchronous>, transform_indices = @transform_3, window_bounds = array<i64: 1, 128>}, {pipeline_mode = #tpu.pipeline_mode<synchronous>, transform_indices = @transform_4, window_bounds = array<i64: 512, 128>}, {pipeline_mode = #tpu.pipeline_mode<synchronous>, transform_indices = @transform_5, window_bounds = array<i64: 1, 128>}, {pipeline_mode = #tpu.pipeline_mode<synchronous>, transform_indices = @transform_6, window_bounds = array<i64: 1, 128>}, {pipeline_mode = #tpu.pipeline_mode<synchronous>, transform_indices = @transform_7, window_bounds = array<i64: 512, 128>}, {pipeline_mode = #tpu.pipeline_mode<synchronous>, transform_indices = @transform_8, window_bounds = array<i64: 1, 128>}, {pipeline_mode = #tpu.pipeline_mode<synchronous>, transform_indices = @transform_9, window_bounds = array<i64: 1, 128>}, {pipeline_mode = #tpu.pipeline_mode<synchronous>, transform_indices = @transform_10, window_bounds = array<i64: 512, 128>}, {pipeline_mode = #tpu.pipeline_mode<synchronous>, transform_indices = @transform_11, window_bounds = array<i64: 1, 128>}, {pipeline_mode = #tpu.pipeline_mode<synchronous>, transform_indices = @transform_12, window_bounds = array<i64: 1, 128>}, {pipeline_mode = #tpu.pipeline_mode<synchronous>, transform_indices = @transform_13, window_bounds = array<i64: 256, 4>}, {pipeline_mode = #tpu.pipeline_mode<synchronous>, transform_indices = @transform_14, window_bounds = array<i64: 1, 4>}, {pipeline_mode = #tpu.pipeline_mode<synchronous>, transform_indices = @transform_15, window_bounds = array<i64: 2, 1>}, {pipeline_mode = #tpu.pipeline_mode<synchronous>, transform_indices = @transform_16, window_bounds = array<i64: 2, 1>}]} {
    %c0 = arith.constant 0 : index
    %c0_0 = arith.constant 0 : index
    %0 = tpu.strided_load %arg1[%c0, %c0_0] {strides = array<i32: 2, 1>} : memref<68x128xf32, #tpu.memory_space<vmem>>, vector<16x128xf32>
    %c34 = arith.constant 34 : index
    %c0_1 = arith.constant 0 : index
    %1 = tpu.strided_load %arg1[%c34, %c0_1] {strides = array<i32: 2, 1>} : memref<68x128xf32, #tpu.memory_space<vmem>>, vector<16x128xf32>
    %2 = tpu.concatenate %0, %1 in 0 : vector<16x128xf32>, vector<16x128xf32> -> vector<32x128xf32>
    %c1 = arith.constant 1 : index
    %c0_2 = arith.constant 0 : index
    %3 = tpu.strided_load %arg1[%c1, %c0_2] {strides = array<i32: 2, 1>} : memref<68x128xf32, #tpu.memory_space<vmem>>, vector<16x128xf32>
    %c35 = arith.constant 35 : index
    %c0_3 = arith.constant 0 : index
    %4 = tpu.strided_load %arg1[%c35, %c0_3] {strides = array<i32: 2, 1>} : memref<68x128xf32, #tpu.memory_space<vmem>>, vector<16x128xf32>
    %5 = tpu.concatenate %3, %4 in 0 : vector<16x128xf32>, vector<16x128xf32> -> vector<32x128xf32>
    %c2 = arith.constant 2 : index
    %c0_4 = arith.constant 0 : index
    %6 = tpu.strided_load %arg1[%c2, %c0_4] {strides = array<i32: 2, 1>} : memref<68x128xf32, #tpu.memory_space<vmem>>, vector<16x128xf32>
    %c36 = arith.constant 36 : index
    %c0_5 = arith.constant 0 : index
    %7 = tpu.strided_load %arg1[%c36, %c0_5] {strides = array<i32: 2, 1>} : memref<68x128xf32, #tpu.memory_space<vmem>>, vector<16x128xf32>
    %8 = tpu.concatenate %6, %7 in 0 : vector<16x128xf32>, vector<16x128xf32> -> vector<32x128xf32>
    %c3 = arith.constant 3 : index
    %c0_6 = arith.constant 0 : index
    %9 = tpu.strided_load %arg1[%c3, %c0_6] {strides = array<i32: 2, 1>} : memref<68x128xf32, #tpu.memory_space<vmem>>, vector<16x128xf32>
    %c37 = arith.constant 37 : index
    %c0_7 = arith.constant 0 : index
    %10 = tpu.strided_load %arg1[%c37, %c0_7] {strides = array<i32: 2, 1>} : memref<68x128xf32, #tpu.memory_space<vmem>>, vector<16x128xf32>
    %11 = tpu.concatenate %9, %10 in 0 : vector<16x128xf32>, vector<16x128xf32> -> vector<32x128xf32>
    %12 = tpu.concatenate %2, %5, %8, %11 in 1 : vector<32x128xf32>, vector<32x128xf32>, vector<32x128xf32>, vector<32x128xf32> -> vector<32x512xf32>
    %13 = arith.truncf %12 : vector<32x512xf32> to vector<32x512xbf16>
    %c0_8 = arith.constant 0 : index
    %c0_9 = arith.constant 0 : index
    %14 = vector.load %arg2[%c0_8, %c0_9] : memref<512x128xbf16, #tpu.memory_space<vmem>>, vector<512x128xbf16>
    %cst = arith.constant dense<0.000000e+00> : vector<32x128xf32>
    %15 = tpu.matmul %13, %14, %cst {dimension_numbers = #tpu.dot_dimension_numbers<[1], [0], [0], [1], [0, 0, 1, 1], [], []>} : vector<32x512xbf16>, vector<512x128xbf16>, vector<32x128xf32> -> vector<32x128xf32>
    %cst_10 = arith.constant dense<0.000000e+00> : vector<128xf32>
    %16 = vector.multi_reduction <add>, %15, %cst_10 [0] : vector<32x128xf32> to vector<128xf32>
    %17 = vector.shape_cast %16 : vector<128xf32> to vector<1x128xf32>
    %18 = arith.mulf %15, %15 : vector<32x128xf32>
    %cst_11 = arith.constant dense<0.000000e+00> : vector<128xf32>
    %19 = vector.multi_reduction <add>, %18, %cst_11 [0] : vector<32x128xf32> to vector<128xf32>
    %20 = vector.shape_cast %19 : vector<128xf32> to vector<1x128xf32>
    %21 = tpu.concatenate %17, %20 in 0 : vector<1x128xf32>, vector<1x128xf32> -> vector<2x128xf32>
    %c8_i32 = arith.constant 8 : i32
    %22 = tpu.dynamic_rotate %21 by %c8_i32 dim 1 : vector<2x128xf32>, i32 -> vector<2x128xf32>
    %23 = arith.addf %21, %22 : vector<2x128xf32>
    %c16_i32 = arith.constant 16 : i32
    %24 = tpu.dynamic_rotate %23 by %c16_i32 dim 1 : vector<2x128xf32>, i32 -> vector<2x128xf32>
    %25 = arith.addf %23, %24 : vector<2x128xf32>
    %c32_i32 = arith.constant 32 : i32
    %26 = tpu.dynamic_rotate %25 by %c32_i32 dim 1 : vector<2x128xf32>, i32 -> vector<2x128xf32>
    %27 = arith.addf %25, %26 : vector<2x128xf32>
    %c64_i32 = arith.constant 64 : i32
    %28 = tpu.dynamic_rotate %27 by %c64_i32 dim 1 : vector<2x128xf32>, i32 -> vector<2x128xf32>
    %29 = arith.addf %27, %28 : vector<2x128xf32>
    %30 = vector.extract_strided_slice %29 {offsets = [0, 0], sizes = [1, 128], strides = [1, 1]} : vector<2x128xf32> to vector<1x128xf32>
    %cst_12 = arith.constant 0.001953125 : f32
    %31 = vector.broadcast %cst_12 : f32 to vector<1x128xf32>
    %32 = arith.mulf %30, %31 : vector<1x128xf32>
    %33 = vector.extract_strided_slice %29 {offsets = [1, 0], sizes = [1, 128], strides = [1, 1]} : vector<2x128xf32> to vector<1x128xf32>
    %cst_13 = arith.constant 0.001953125 : f32
    %34 = vector.broadcast %cst_13 : f32 to vector<1x128xf32>
    %35 = arith.mulf %33, %34 : vector<1x128xf32>
    %36 = arith.mulf %32, %32 : vector<1x128xf32>
    %37 = arith.subf %35, %36 : vector<1x128xf32>
    %cst_14 = arith.constant 0.000000e+00 : f32
    %38 = vector.broadcast %cst_14 : f32 to vector<1x128xf32>
    %39 = arith.maximumf %37, %38 : vector<1x128xf32>
    %c0_15 = arith.constant 0 : index
    %c0_16 = arith.constant 0 : index
    %40 = vector.load %arg3[%c0_15, %c0_16] : memref<1x128xf32, #tpu.memory_space<vmem>>, vector<1x128xf32>
    %cst_17 = arith.constant 9.99999974E-6 : f32
    %41 = vector.broadcast %cst_17 : f32 to vector<1x128xf32>
    %42 = arith.addf %39, %41 : vector<1x128xf32>
    %43 = math.rsqrt %42 : vector<1x128xf32>
    %44 = arith.mulf %40, %43 : vector<1x128xf32>
    %c0_18 = arith.constant 0 : index
    %c0_19 = arith.constant 0 : index
    %45 = vector.load %arg4[%c0_18, %c0_19] : memref<1x128xf32, #tpu.memory_space<vmem>>, vector<1x128xf32>
    %46 = arith.mulf %32, %44 : vector<1x128xf32>
    %47 = arith.subf %45, %46 : vector<1x128xf32>
    %48 = vector.broadcast %44 : vector<1x128xf32> to vector<32x128xf32>
    %49 = arith.mulf %15, %48 : vector<32x128xf32>
    %50 = vector.broadcast %47 : vector<1x128xf32> to vector<32x128xf32>
    %51 = arith.addf %49, %50 : vector<32x128xf32>
    %cst_20 = arith.constant 0.000000e+00 : f32
    %52 = vector.broadcast %cst_20 : f32 to vector<32x128xf32>
    %53 = arith.cmpf ogt, %51, %52 : vector<32x128xf32>
    %cst_21 = arith.constant 2.000000e-01 : f32
    %54 = vector.broadcast %cst_21 : f32 to vector<32x128xf32>
    %55 = arith.mulf %54, %51 : vector<32x128xf32>
    %56 = arith.select %53, %51, %55 : vector<32x128xi1>, vector<32x128xf32>
    %cst_22 = arith.constant 0.000000e+00 : f32
    %57 = vector.broadcast %cst_22 : f32 to vector<36x128xf32>
    %c0_23 = arith.constant 0 : index
    %c0_24 = arith.constant 0 : index
    %58 = vector.load %arg18[%c0_23, %c0_24] : memref<36x128xf32, #tpu.memory_space<vmem>>, vector<36x128xf32>
    tpu.vector_store %arg18[%c0_23, %c0_24], %57 {strides = array<i32>} : memref<36x128xf32, #tpu.memory_space<vmem>>, vector<36x128xf32>,
    %59 = vector.extract_strided_slice %56 {offsets = [0, 0], sizes = [16, 128], strides = [1, 1]} : vector<32x128xf32> to vector<16x128xf32>
    %c1_25 = arith.constant 1 : index
    %c0_26 = arith.constant 0 : index
    %60 = vector.load %arg18[%c1_25, %c0_26] : memref<36x128xf32, #tpu.memory_space<vmem>>, vector<16x128xf32>
    tpu.vector_store %arg18[%c1_25, %c0_26], %59 {strides = array<i32>} : memref<36x128xf32, #tpu.memory_space<vmem>>, vector<16x128xf32>,
    %61 = vector.extract_strided_slice %56 {offsets = [16, 0], sizes = [16, 128], strides = [1, 1]} : vector<32x128xf32> to vector<16x128xf32>
    %c19 = arith.constant 19 : index
    %c0_27 = arith.constant 0 : index
    %62 = vector.load %arg18[%c19, %c0_27] : memref<36x128xf32, #tpu.memory_space<vmem>>, vector<16x128xf32>
    tpu.vector_store %arg18[%c19, %c0_27], %61 {strides = array<i32>} : memref<36x128xf32, #tpu.memory_space<vmem>>, vector<16x128xf32>,
    %c0_28 = arith.constant 0 : index
    %c0_29 = arith.constant 0 : index
    %63 = tpu.strided_load %arg18[%c0_28, %c0_29] {strides = array<i32: 2, 1>} : memref<36x128xf32, #tpu.memory_space<vmem>>, vector<8x128xf32>
    %c18 = arith.constant 18 : index
    %c0_30 = arith.constant 0 : index
    %64 = tpu.strided_load %arg18[%c18, %c0_30] {strides = array<i32: 2, 1>} : memref<36x128xf32, #tpu.memory_space<vmem>>, vector<8x128xf32>
    %65 = tpu.concatenate %63, %64 in 0 : vector<8x128xf32>, vector<8x128xf32> -> vector<16x128xf32>
    %c1_31 = arith.constant 1 : index
    %c0_32 = arith.constant 0 : index
    %66 = tpu.strided_load %arg18[%c1_31, %c0_32] {strides = array<i32: 2, 1>} : memref<36x128xf32, #tpu.memory_space<vmem>>, vector<8x128xf32>
    %c19_33 = arith.constant 19 : index
    %c0_34 = arith.constant 0 : index
    %67 = tpu.strided_load %arg18[%c19_33, %c0_34] {strides = array<i32: 2, 1>} : memref<36x128xf32, #tpu.memory_space<vmem>>, vector<8x128xf32>
    %68 = tpu.concatenate %66, %67 in 0 : vector<8x128xf32>, vector<8x128xf32> -> vector<16x128xf32>
    %c2_35 = arith.constant 2 : index
    %c0_36 = arith.constant 0 : index
    %69 = tpu.strided_load %arg18[%c2_35, %c0_36] {strides = array<i32: 2, 1>} : memref<36x128xf32, #tpu.memory_space<vmem>>, vector<8x128xf32>
    %c20 = arith.constant 20 : index
    %c0_37 = arith.constant 0 : index
    %70 = tpu.strided_load %arg18[%c20, %c0_37] {strides = array<i32: 2, 1>} : memref<36x128xf32, #tpu.memory_space<vmem>>, vector<8x128xf32>
    %71 = tpu.concatenate %69, %70 in 0 : vector<8x128xf32>, vector<8x128xf32> -> vector<16x128xf32>
    %c3_38 = arith.constant 3 : index
    %c0_39 = arith.constant 0 : index
    %72 = tpu.strided_load %arg18[%c3_38, %c0_39] {strides = array<i32: 2, 1>} : memref<36x128xf32, #tpu.memory_space<vmem>>, vector<8x128xf32>
    %c21 = arith.constant 21 : index
    %c0_40 = arith.constant 0 : index
    %73 = tpu.strided_load %arg18[%c21, %c0_40] {strides = array<i32: 2, 1>} : memref<36x128xf32, #tpu.memory_space<vmem>>, vector<8x128xf32>
    %74 = tpu.concatenate %72, %73 in 0 : vector<8x128xf32>, vector<8x128xf32> -> vector<16x128xf32>
    %75 = tpu.concatenate %65, %68, %71, %74 in 1 : vector<16x128xf32>, vector<16x128xf32>, vector<16x128xf32>, vector<16x128xf32> -> vector<16x512xf32>
    %76 = arith.truncf %75 : vector<16x512xf32> to vector<16x512xbf16>
    %c0_41 = arith.constant 0 : index
    %c0_42 = arith.constant 0 : index
    %77 = vector.load %arg5[%c0_41, %c0_42] : memref<512x128xbf16, #tpu.memory_space<vmem>>, vector<512x128xbf16>
    %cst_43 = arith.constant dense<0.000000e+00> : vector<16x128xf32>
    %78 = tpu.matmul %76, %77, %cst_43 {dimension_numbers = #tpu.dot_dimension_numbers<[1], [0], [0], [1], [0, 0, 1, 1], [], []>} : vector<16x512xbf16>, vector<512x128xbf16>, vector<16x128xf32> -> vector<16x128xf32>
    %cst_44 = arith.constant dense<0.000000e+00> : vector<128xf32>
    %79 = vector.multi_reduction <add>, %78, %cst_44 [0] : vector<16x128xf32> to vector<128xf32>
    %80 = vector.shape_cast %79 : vector<128xf32> to vector<1x128xf32>
    %81 = arith.mulf %78, %78 : vector<16x128xf32>
    %cst_45 = arith.constant dense<0.000000e+00> : vector<128xf32>
    %82 = vector.multi_reduction <add>, %81, %cst_45 [0] : vector<16x128xf32> to vector<128xf32>
    %83 = vector.shape_cast %82 : vector<128xf32> to vector<1x128xf32>
    %84 = tpu.concatenate %80, %83 in 0 : vector<1x128xf32>, vector<1x128xf32> -> vector<2x128xf32>
    %c16_i32_46 = arith.constant 16 : i32
    %85 = tpu.dynamic_rotate %84 by %c16_i32_46 dim 1 : vector<2x128xf32>, i32 -> vector<2x128xf32>
    %86 = arith.addf %84, %85 : vector<2x128xf32>
    %c32_i32_47 = arith.constant 32 : i32
    %87 = tpu.dynamic_rotate %86 by %c32_i32_47 dim 1 : vector<2x128xf32>, i32 -> vector<2x128xf32>
    %88 = arith.addf %86, %87 : vector<2x128xf32>
    %c64_i32_48 = arith.constant 64 : i32
    %89 = tpu.dynamic_rotate %88 by %c64_i32_48 dim 1 : vector<2x128xf32>, i32 -> vector<2x128xf32>
    %90 = arith.addf %88, %89 : vector<2x128xf32>
    %91 = vector.extract_strided_slice %90 {offsets = [0, 0], sizes = [1, 128], strides = [1, 1]} : vector<2x128xf32> to vector<1x128xf32>
    %cst_49 = arith.constant 7.812500e-03 : f32
    %92 = vector.broadcast %cst_49 : f32 to vector<1x128xf32>
    %93 = arith.mulf %91, %92 : vector<1x128xf32>
    %94 = vector.extract_strided_slice %90 {offsets = [1, 0], sizes = [1, 128], strides = [1, 1]} : vector<2x128xf32> to vector<1x128xf32>
    %cst_50 = arith.constant 7.812500e-03 : f32
    %95 = vector.broadcast %cst_50 : f32 to vector<1x128xf32>
    %96 = arith.mulf %94, %95 : vector<1x128xf32>
    %97 = arith.mulf %93, %93 : vector<1x128xf32>
    %98 = arith.subf %96, %97 : vector<1x128xf32>
    %cst_51 = arith.constant 0.000000e+00 : f32
    %99 = vector.broadcast %cst_51 : f32 to vector<1x128xf32>
    %100 = arith.maximumf %98, %99 : vector<1x128xf32>
    %c0_52 = arith.constant 0 : index
    %c0_53 = arith.constant 0 : index
    %101 = vector.load %arg6[%c0_52, %c0_53] : memref<1x128xf32, #tpu.memory_space<vmem>>, vector<1x128xf32>
    %cst_54 = arith.constant 9.99999974E-6 : f32
    %102 = vector.broadcast %cst_54 : f32 to vector<1x128xf32>
    %103 = arith.addf %100, %102 : vector<1x128xf32>
    %104 = math.rsqrt %103 : vector<1x128xf32>
    %105 = arith.mulf %101, %104 : vector<1x128xf32>
    %c0_55 = arith.constant 0 : index
    %c0_56 = arith.constant 0 : index
    %106 = vector.load %arg7[%c0_55, %c0_56] : memref<1x128xf32, #tpu.memory_space<vmem>>, vector<1x128xf32>
    %107 = arith.mulf %93, %105 : vector<1x128xf32>
    %108 = arith.subf %106, %107 : vector<1x128xf32>
    %109 = vector.broadcast %105 : vector<1x128xf32> to vector<16x128xf32>
    %110 = arith.mulf %78, %109 : vector<16x128xf32>
    %111 = vector.broadcast %108 : vector<1x128xf32> to vector<16x128xf32>
    %112 = arith.addf %110, %111 : vector<16x128xf32>
    %cst_57 = arith.constant 0.000000e+00 : f32
    %113 = vector.broadcast %cst_57 : f32 to vector<16x128xf32>
    %114 = arith.cmpf ogt, %112, %113 : vector<16x128xf32>
    %cst_58 = arith.constant 2.000000e-01 : f32
    %115 = vector.broadcast %cst_58 : f32 to vector<16x128xf32>
    %116 = arith.mulf %115, %112 : vector<16x128xf32>
    %117 = arith.select %114, %112, %116 : vector<16x128xi1>, vector<16x128xf32>
    %cst_59 = arith.constant 0.000000e+00 : f32
    %118 = vector.broadcast %cst_59 : f32 to vector<20x128xf32>
    %c0_60 = arith.constant 0 : index
    %c0_61 = arith.constant 0 : index
    %119 = vector.load %arg19[%c0_60, %c0_61] : memref<20x128xf32, #tpu.memory_space<vmem>>, vector<20x128xf32>
    tpu.vector_store %arg19[%c0_60, %c0_61], %118 {strides = array<i32>} : memref<20x128xf32, #tpu.memory_space<vmem>>, vector<20x128xf32>,
    %120 = vector.extract_strided_slice %117 {offsets = [0, 0], sizes = [8, 128], strides = [1, 1]} : vector<16x128xf32> to vector<8x128xf32>
    %c1_62 = arith.constant 1 : index
    %c0_63 = arith.constant 0 : index
    %121 = vector.load %arg19[%c1_62, %c0_63] : memref<20x128xf32, #tpu.memory_space<vmem>>, vector<8x128xf32>
    tpu.vector_store %arg19[%c1_62, %c0_63], %120 {strides = array<i32>} : memref<20x128xf32, #tpu.memory_space<vmem>>, vector<8x128xf32>,
    %122 = vector.extract_strided_slice %117 {offsets = [8, 0], sizes = [8, 128], strides = [1, 1]} : vector<16x128xf32> to vector<8x128xf32>
    %c11 = arith.constant 11 : index
    %c0_64 = arith.constant 0 : index
    %123 = vector.load %arg19[%c11, %c0_64] : memref<20x128xf32, #tpu.memory_space<vmem>>, vector<8x128xf32>
    tpu.vector_store %arg19[%c11, %c0_64], %122 {strides = array<i32>} : memref<20x128xf32, #tpu.memory_space<vmem>>, vector<8x128xf32>,
    %c0_65 = arith.constant 0 : index
    %c0_66 = arith.constant 0 : index
    %124 = tpu.strided_load %arg19[%c0_65, %c0_66] {strides = array<i32: 2, 1>} : memref<20x128xf32, #tpu.memory_space<vmem>>, vector<4x128xf32>
    %c10 = arith.constant 10 : index
    %c0_67 = arith.constant 0 : index
    %125 = tpu.strided_load %arg19[%c10, %c0_67] {strides = array<i32: 2, 1>} : memref<20x128xf32, #tpu.memory_space<vmem>>, vector<4x128xf32>
    %126 = tpu.concatenate %124, %125 in 0 : vector<4x128xf32>, vector<4x128xf32> -> vector<8x128xf32>
    %c1_68 = arith.constant 1 : index
    %c0_69 = arith.constant 0 : index
    %127 = tpu.strided_load %arg19[%c1_68, %c0_69] {strides = array<i32: 2, 1>} : memref<20x128xf32, #tpu.memory_space<vmem>>, vector<4x128xf32>
    %c11_70 = arith.constant 11 : index
    %c0_71 = arith.constant 0 : index
    %128 = tpu.strided_load %arg19[%c11_70, %c0_71] {strides = array<i32: 2, 1>} : memref<20x128xf32, #tpu.memory_space<vmem>>, vector<4x128xf32>
    %129 = tpu.concatenate %127, %128 in 0 : vector<4x128xf32>, vector<4x128xf32> -> vector<8x128xf32>
    %c2_72 = arith.constant 2 : index
    %c0_73 = arith.constant 0 : index
    %130 = tpu.strided_load %arg19[%c2_72, %c0_73] {strides = array<i32: 2, 1>} : memref<20x128xf32, #tpu.memory_space<vmem>>, vector<4x128xf32>
    %c12 = arith.constant 12 : index
    %c0_74 = arith.constant 0 : index
    %131 = tpu.strided_load %arg19[%c12, %c0_74] {strides = array<i32: 2, 1>} : memref<20x128xf32, #tpu.memory_space<vmem>>, vector<4x128xf32>
    %132 = tpu.concatenate %130, %131 in 0 : vector<4x128xf32>, vector<4x128xf32> -> vector<8x128xf32>
    %c3_75 = arith.constant 3 : index
    %c0_76 = arith.constant 0 : index
    %133 = tpu.strided_load %arg19[%c3_75, %c0_76] {strides = array<i32: 2, 1>} : memref<20x128xf32, #tpu.memory_space<vmem>>, vector<4x128xf32>
    %c13 = arith.constant 13 : index
    %c0_77 = arith.constant 0 : index
    %134 = tpu.strided_load %arg19[%c13, %c0_77] {strides = array<i32: 2, 1>} : memref<20x128xf32, #tpu.memory_space<vmem>>, vector<4x128xf32>
    %135 = tpu.concatenate %133, %134 in 0 : vector<4x128xf32>, vector<4x128xf32> -> vector<8x128xf32>
    %136 = tpu.concatenate %126, %129, %132, %135 in 1 : vector<8x128xf32>, vector<8x128xf32>, vector<8x128xf32>, vector<8x128xf32> -> vector<8x512xf32>
    %137 = arith.truncf %136 : vector<8x512xf32> to vector<8x512xbf16>
    %c0_78 = arith.constant 0 : index
    %c0_79 = arith.constant 0 : index
    %138 = vector.load %arg8[%c0_78, %c0_79] : memref<512x128xbf16, #tpu.memory_space<vmem>>, vector<512x128xbf16>
    %cst_80 = arith.constant dense<0.000000e+00> : vector<8x128xf32>
    %139 = tpu.matmul %137, %138, %cst_80 {dimension_numbers = #tpu.dot_dimension_numbers<[1], [0], [0], [1], [0, 0, 1, 1], [], []>} : vector<8x512xbf16>, vector<512x128xbf16>, vector<8x128xf32> -> vector<8x128xf32>
    %cst_81 = arith.constant dense<0.000000e+00> : vector<128xf32>
    %140 = vector.multi_reduction <add>, %139, %cst_81 [0] : vector<8x128xf32> to vector<128xf32>
    %141 = vector.shape_cast %140 : vector<128xf32> to vector<1x128xf32>
    %142 = arith.mulf %139, %139 : vector<8x128xf32>
    %cst_82 = arith.constant dense<0.000000e+00> : vector<128xf32>
    %143 = vector.multi_reduction <add>, %142, %cst_82 [0] : vector<8x128xf32> to vector<128xf32>
    %144 = vector.shape_cast %143 : vector<128xf32> to vector<1x128xf32>
    %145 = tpu.concatenate %141, %144 in 0 : vector<1x128xf32>, vector<1x128xf32> -> vector<2x128xf32>
    %c32_i32_83 = arith.constant 32 : i32
    %146 = tpu.dynamic_rotate %145 by %c32_i32_83 dim 1 : vector<2x128xf32>, i32 -> vector<2x128xf32>
    %147 = arith.addf %145, %146 : vector<2x128xf32>
    %c64_i32_84 = arith.constant 64 : i32
    %148 = tpu.dynamic_rotate %147 by %c64_i32_84 dim 1 : vector<2x128xf32>, i32 -> vector<2x128xf32>
    %149 = arith.addf %147, %148 : vector<2x128xf32>
    %150 = vector.extract_strided_slice %149 {offsets = [0, 0], sizes = [1, 128], strides = [1, 1]} : vector<2x128xf32> to vector<1x128xf32>
    %cst_85 = arith.constant 3.125000e-02 : f32
    %151 = vector.broadcast %cst_85 : f32 to vector<1x128xf32>
    %152 = arith.mulf %150, %151 : vector<1x128xf32>
    %153 = vector.extract_strided_slice %149 {offsets = [1, 0], sizes = [1, 128], strides = [1, 1]} : vector<2x128xf32> to vector<1x128xf32>
    %cst_86 = arith.constant 3.125000e-02 : f32
    %154 = vector.broadcast %cst_86 : f32 to vector<1x128xf32>
    %155 = arith.mulf %153, %154 : vector<1x128xf32>
    %156 = arith.mulf %152, %152 : vector<1x128xf32>
    %157 = arith.subf %155, %156 : vector<1x128xf32>
    %cst_87 = arith.constant 0.000000e+00 : f32
    %158 = vector.broadcast %cst_87 : f32 to vector<1x128xf32>
    %159 = arith.maximumf %157, %158 : vector<1x128xf32>
    %c0_88 = arith.constant 0 : index
    %c0_89 = arith.constant 0 : index
    %160 = vector.load %arg9[%c0_88, %c0_89] : memref<1x128xf32, #tpu.memory_space<vmem>>, vector<1x128xf32>
    %cst_90 = arith.constant 9.99999974E-6 : f32
    %161 = vector.broadcast %cst_90 : f32 to vector<1x128xf32>
    %162 = arith.addf %159, %161 : vector<1x128xf32>
    %163 = math.rsqrt %162 : vector<1x128xf32>
    %164 = arith.mulf %160, %163 : vector<1x128xf32>
    %c0_91 = arith.constant 0 : index
    %c0_92 = arith.constant 0 : index
    %165 = vector.load %arg10[%c0_91, %c0_92] : memref<1x128xf32, #tpu.memory_space<vmem>>, vector<1x128xf32>
    %166 = arith.mulf %152, %164 : vector<1x128xf32>
    %167 = arith.subf %165, %166 : vector<1x128xf32>
    %168 = vector.broadcast %164 : vector<1x128xf32> to vector<8x128xf32>
    %169 = arith.mulf %139, %168 : vector<8x128xf32>
    %170 = vector.broadcast %167 : vector<1x128xf32> to vector<8x128xf32>
    %171 = arith.addf %169, %170 : vector<8x128xf32>
    %cst_93 = arith.constant 0.000000e+00 : f32
    %172 = vector.broadcast %cst_93 : f32 to vector<8x128xf32>
    %173 = arith.cmpf ogt, %171, %172 : vector<8x128xf32>
    %cst_94 = arith.constant 2.000000e-01 : f32
    %174 = vector.broadcast %cst_94 : f32 to vector<8x128xf32>
    %175 = arith.mulf %174, %171 : vector<8x128xf32>
    %176 = arith.select %173, %171, %175 : vector<8x128xi1>, vector<8x128xf32>
    %cst_95 = arith.constant 0.000000e+00 : f32
    %177 = vector.broadcast %cst_95 : f32 to vector<12x128xf32>
    %c0_96 = arith.constant 0 : index
    %c0_97 = arith.constant 0 : index
    %178 = vector.load %arg20[%c0_96, %c0_97] : memref<12x128xf32, #tpu.memory_space<vmem>>, vector<12x128xf32>
    tpu.vector_store %arg20[%c0_96, %c0_97], %177 {strides = array<i32>} : memref<12x128xf32, #tpu.memory_space<vmem>>, vector<12x128xf32>,
    %179 = vector.extract_strided_slice %176 {offsets = [0, 0], sizes = [4, 128], strides = [1, 1]} : vector<8x128xf32> to vector<4x128xf32>
    %c1_98 = arith.constant 1 : index
    %c0_99 = arith.constant 0 : index
    %180 = vector.load %arg20[%c1_98, %c0_99] : memref<12x128xf32, #tpu.memory_space<vmem>>, vector<4x128xf32>
    tpu.vector_store %arg20[%c1_98, %c0_99], %179 {strides = array<i32>} : memref<12x128xf32, #tpu.memory_space<vmem>>, vector<4x128xf32>,
    %181 = vector.extract_strided_slice %176 {offsets = [4, 0], sizes = [4, 128], strides = [1, 1]} : vector<8x128xf32> to vector<4x128xf32>
    %c7 = arith.constant 7 : index
    %c0_100 = arith.constant 0 : index
    %182 = vector.load %arg20[%c7, %c0_100] : memref<12x128xf32, #tpu.memory_space<vmem>>, vector<4x128xf32>
    tpu.vector_store %arg20[%c7, %c0_100], %181 {strides = array<i32>} : memref<12x128xf32, #tpu.memory_space<vmem>>, vector<4x128xf32>,
    %c0_101 = arith.constant 0 : index
    %c0_102 = arith.constant 0 : index
    %183 = tpu.strided_load %arg20[%c0_101, %c0_102] {strides = array<i32: 2, 1>} : memref<12x128xf32, #tpu.memory_space<vmem>>, vector<2x128xf32>
    %c6 = arith.constant 6 : index
    %c0_103 = arith.constant 0 : index
    %184 = tpu.strided_load %arg20[%c6, %c0_103] {strides = array<i32: 2, 1>} : memref<12x128xf32, #tpu.memory_space<vmem>>, vector<2x128xf32>
    %185 = tpu.concatenate %183, %184 in 0 : vector<2x128xf32>, vector<2x128xf32> -> vector<4x128xf32>
    %c1_104 = arith.constant 1 : index
    %c0_105 = arith.constant 0 : index
    %186 = tpu.strided_load %arg20[%c1_104, %c0_105] {strides = array<i32: 2, 1>} : memref<12x128xf32, #tpu.memory_space<vmem>>, vector<2x128xf32>
    %c7_106 = arith.constant 7 : index
    %c0_107 = arith.constant 0 : index
    %187 = tpu.strided_load %arg20[%c7_106, %c0_107] {strides = array<i32: 2, 1>} : memref<12x128xf32, #tpu.memory_space<vmem>>, vector<2x128xf32>
    %188 = tpu.concatenate %186, %187 in 0 : vector<2x128xf32>, vector<2x128xf32> -> vector<4x128xf32>
    %c2_108 = arith.constant 2 : index
    %c0_109 = arith.constant 0 : index
    %189 = tpu.strided_load %arg20[%c2_108, %c0_109] {strides = array<i32: 2, 1>} : memref<12x128xf32, #tpu.memory_space<vmem>>, vector<2x128xf32>
    %c8 = arith.constant 8 : index
    %c0_110 = arith.constant 0 : index
    %190 = tpu.strided_load %arg20[%c8, %c0_110] {strides = array<i32: 2, 1>} : memref<12x128xf32, #tpu.memory_space<vmem>>, vector<2x128xf32>
    %191 = tpu.concatenate %189, %190 in 0 : vector<2x128xf32>, vector<2x128xf32> -> vector<4x128xf32>
    %c3_111 = arith.constant 3 : index
    %c0_112 = arith.constant 0 : index
    %192 = tpu.strided_load %arg20[%c3_111, %c0_112] {strides = array<i32: 2, 1>} : memref<12x128xf32, #tpu.memory_space<vmem>>, vector<2x128xf32>
    %c9 = arith.constant 9 : index
    %c0_113 = arith.constant 0 : index
    %193 = tpu.strided_load %arg20[%c9, %c0_113] {strides = array<i32: 2, 1>} : memref<12x128xf32, #tpu.memory_space<vmem>>, vector<2x128xf32>
    %194 = tpu.concatenate %192, %193 in 0 : vector<2x128xf32>, vector<2x128xf32> -> vector<4x128xf32>
    %195 = tpu.concatenate %185, %188, %191, %194 in 1 : vector<4x128xf32>, vector<4x128xf32>, vector<4x128xf32>, vector<4x128xf32> -> vector<4x512xf32>
    %196 = arith.truncf %195 : vector<4x512xf32> to vector<4x512xbf16>
    %c0_114 = arith.constant 0 : index
    %c0_115 = arith.constant 0 : index
    %197 = vector.load %arg11[%c0_114, %c0_115] : memref<512x128xbf16, #tpu.memory_space<vmem>>, vector<512x128xbf16>
    %cst_116 = arith.constant dense<0.000000e+00> : vector<4x128xf32>
    %198 = tpu.matmul %196, %197, %cst_116 {dimension_numbers = #tpu.dot_dimension_numbers<[1], [0], [0], [1], [0, 0, 1, 1], [], []>} : vector<4x512xbf16>, vector<512x128xbf16>, vector<4x128xf32> -> vector<4x128xf32>
    %cst_117 = arith.constant dense<0.000000e+00> : vector<128xf32>
    %199 = vector.multi_reduction <add>, %198, %cst_117 [0] : vector<4x128xf32> to vector<128xf32>
    %200 = vector.shape_cast %199 : vector<128xf32> to vector<1x128xf32>
    %201 = arith.mulf %198, %198 : vector<4x128xf32>
    %cst_118 = arith.constant dense<0.000000e+00> : vector<128xf32>
    %202 = vector.multi_reduction <add>, %201, %cst_118 [0] : vector<4x128xf32> to vector<128xf32>
    %203 = vector.shape_cast %202 : vector<128xf32> to vector<1x128xf32>
    %204 = tpu.concatenate %200, %203 in 0 : vector<1x128xf32>, vector<1x128xf32> -> vector<2x128xf32>
    %c64_i32_119 = arith.constant 64 : i32
    %205 = tpu.dynamic_rotate %204 by %c64_i32_119 dim 1 : vector<2x128xf32>, i32 -> vector<2x128xf32>
    %206 = arith.addf %204, %205 : vector<2x128xf32>
    %207 = vector.extract_strided_slice %206 {offsets = [0, 0], sizes = [1, 128], strides = [1, 1]} : vector<2x128xf32> to vector<1x128xf32>
    %cst_120 = arith.constant 1.250000e-01 : f32
    %208 = vector.broadcast %cst_120 : f32 to vector<1x128xf32>
    %209 = arith.mulf %207, %208 : vector<1x128xf32>
    %210 = vector.extract_strided_slice %206 {offsets = [1, 0], sizes = [1, 128], strides = [1, 1]} : vector<2x128xf32> to vector<1x128xf32>
    %cst_121 = arith.constant 1.250000e-01 : f32
    %211 = vector.broadcast %cst_121 : f32 to vector<1x128xf32>
    %212 = arith.mulf %210, %211 : vector<1x128xf32>
    %213 = arith.mulf %209, %209 : vector<1x128xf32>
    %214 = arith.subf %212, %213 : vector<1x128xf32>
    %cst_122 = arith.constant 0.000000e+00 : f32
    %215 = vector.broadcast %cst_122 : f32 to vector<1x128xf32>
    %216 = arith.maximumf %214, %215 : vector<1x128xf32>
    %c0_123 = arith.constant 0 : index
    %c0_124 = arith.constant 0 : index
    %217 = vector.load %arg12[%c0_123, %c0_124] : memref<1x128xf32, #tpu.memory_space<vmem>>, vector<1x128xf32>
    %cst_125 = arith.constant 9.99999974E-6 : f32
    %218 = vector.broadcast %cst_125 : f32 to vector<1x128xf32>
    %219 = arith.addf %216, %218 : vector<1x128xf32>
    %220 = math.rsqrt %219 : vector<1x128xf32>
    %221 = arith.mulf %217, %220 : vector<1x128xf32>
    %c0_126 = arith.constant 0 : index
    %c0_127 = arith.constant 0 : index
    %222 = vector.load %arg13[%c0_126, %c0_127] : memref<1x128xf32, #tpu.memory_space<vmem>>, vector<1x128xf32>
    %223 = arith.mulf %209, %221 : vector<1x128xf32>
    %224 = arith.subf %222, %223 : vector<1x128xf32>
    %225 = vector.broadcast %221 : vector<1x128xf32> to vector<4x128xf32>
    %226 = arith.mulf %198, %225 : vector<4x128xf32>
    %227 = vector.broadcast %224 : vector<1x128xf32> to vector<4x128xf32>
    %228 = arith.addf %226, %227 : vector<4x128xf32>
    %cst_128 = arith.constant 0.000000e+00 : f32
    %229 = vector.broadcast %cst_128 : f32 to vector<4x128xf32>
    %230 = arith.cmpf ogt, %228, %229 : vector<4x128xf32>
    %cst_129 = arith.constant 2.000000e-01 : f32
    %231 = vector.broadcast %cst_129 : f32 to vector<4x128xf32>
    %232 = arith.mulf %231, %228 : vector<4x128xf32>
    %233 = arith.select %230, %228, %232 : vector<4x128xi1>, vector<4x128xf32>
    %234 = vector.extract_strided_slice %233 {offsets = [0, 0], sizes = [1, 128], strides = [1, 1]} : vector<4x128xf32> to vector<1x128xf32>
    %235 = vector.extract_strided_slice %233 {offsets = [1, 0], sizes = [1, 128], strides = [1, 1]} : vector<4x128xf32> to vector<1x128xf32>
    %236 = tpu.concatenate %234, %235 in 1 : vector<1x128xf32>, vector<1x128xf32> -> vector<1x256xf32>
    %237 = vector.extract_strided_slice %233 {offsets = [2, 0], sizes = [1, 128], strides = [1, 1]} : vector<4x128xf32> to vector<1x128xf32>
    %238 = vector.extract_strided_slice %233 {offsets = [3, 0], sizes = [1, 128], strides = [1, 1]} : vector<4x128xf32> to vector<1x128xf32>
    %239 = tpu.concatenate %237, %238 in 1 : vector<1x128xf32>, vector<1x128xf32> -> vector<1x256xf32>
    %240 = tpu.concatenate %236, %239 in 0 : vector<1x256xf32>, vector<1x256xf32> -> vector<2x256xf32>
    %241 = arith.truncf %240 : vector<2x256xf32> to vector<2x256xbf16>
    %c0_130 = arith.constant 0 : index
    %c0_131 = arith.constant 0 : index
    %242 = vector.load %arg14[%c0_130, %c0_131] : memref<256x4xbf16, #tpu.memory_space<vmem>>, vector<256x4xbf16>
    %cst_132 = arith.constant dense<0.000000e+00> : vector<2x4xf32>
    %243 = tpu.matmul %241, %242, %cst_132 {dimension_numbers = #tpu.dot_dimension_numbers<[1], [0], [0], [1], [0, 0, 1, 1], [], []>} : vector<2x256xbf16>, vector<256x4xbf16>, vector<2x4xf32> -> vector<2x4xf32>
    %c0_133 = arith.constant 0 : index
    %c0_134 = arith.constant 0 : index
    %244 = vector.load %arg15[%c0_133, %c0_134] : memref<1x4xf32, #tpu.memory_space<vmem>>, vector<1x4xf32>
    %245 = vector.broadcast %244 : vector<1x4xf32> to vector<2x4xf32>
    %246 = arith.addf %243, %245 : vector<2x4xf32>
    %247 = tpu.iota {dimensions = array<i32: 1>} : vector<2x4xi32>
    %c0_135 = arith.constant 0 : index
    %c0_136 = arith.constant 0 : index
    %248 = vector.load %arg16[%c0_135, %c0_136] : memref<2x1xi32, #tpu.memory_space<vmem>>, vector<2x1xi32>
    %249 = vector.broadcast %248 : vector<2x1xi32> to vector<2x4xi32>
    %250 = arith.cmpi eq, %247, %249 : vector<2x4xi32>
    %cst_137 = arith.constant 0.000000e+00 : f32
    %251 = vector.broadcast %cst_137 : f32 to vector<2x4xf32>
    %252 = arith.select %250, %246, %251 : vector<2x4xi1>, vector<2x4xf32>
    %cst_138 = arith.constant dense<0.000000e+00> : vector<2xf32>
    %253 = vector.multi_reduction <add>, %252, %cst_138 [1] : vector<2x4xf32> to vector<2xf32>
    %254 = vector.shape_cast %253 : vector<2xf32> to vector<2x1xf32>
    %c0_139 = arith.constant 0 : index
    %c0_140 = arith.constant 0 : index
    %255 = vector.load %arg17[%c0_139, %c0_140] : memref<2x1xf32, #tpu.memory_space<vmem>>, vector<2x1xf32>
    tpu.vector_store %arg17[%c0_139, %c0_140], %254 {strides = array<i32>} : memref<2x1xf32, #tpu.memory_space<vmem>>, vector<2x1xf32>,
    return
  }
  func.func @transform_0(%arg0: i32) -> (i32, i32) {
    %c0_i32 = arith.constant 0 : i32
    %c0_i32_0 = arith.constant 0 : i32
    %c0_i32_1 = arith.constant 0 : i32
    return %c0_i32, %c0_i32_0 : i32, i32
  }
  func.func @transform_1(%arg0: i32) -> (i32, i32) {
    %c0_i32 = arith.constant 0 : i32
    %c0_i32_0 = arith.constant 0 : i32
    %c0_i32_1 = arith.constant 0 : i32
    return %c0_i32, %c0_i32_0 : i32, i32
  }
  func.func @transform_2(%arg0: i32) -> (i32, i32) {
    %c0_i32 = arith.constant 0 : i32
    %c0_i32_0 = arith.constant 0 : i32
    %c0_i32_1 = arith.constant 0 : i32
    return %c0_i32, %c0_i32_0 : i32, i32
  }
  func.func @transform_3(%arg0: i32) -> (i32, i32) {
    %c0_i32 = arith.constant 0 : i32
    %c0_i32_0 = arith.constant 0 : i32
    %c0_i32_1 = arith.constant 0 : i32
    return %c0_i32, %c0_i32_0 : i32, i32
  }
  func.func @transform_4(%arg0: i32) -> (i32, i32) {
    %c0_i32 = arith.constant 0 : i32
    %c0_i32_0 = arith.constant 0 : i32
    %c0_i32_1 = arith.constant 0 : i32
    return %c0_i32, %c0_i32_0 : i32, i32
  }
  func.func @transform_5(%arg0: i32) -> (i32, i32) {
    %c0_i32 = arith.constant 0 : i32
    %c0_i32_0 = arith.constant 0 : i32
    %c0_i32_1 = arith.constant 0 : i32
    return %c0_i32, %c0_i32_0 : i32, i32
  }
  func.func @transform_6(%arg0: i32) -> (i32, i32) {
    %c0_i32 = arith.constant 0 : i32
    %c0_i32_0 = arith.constant 0 : i32
    %c0_i32_1 = arith.constant 0 : i32
    return %c0_i32, %c0_i32_0 : i32, i32
  }
  func.func @transform_7(%arg0: i32) -> (i32, i32) {
    %c0_i32 = arith.constant 0 : i32
    %c0_i32_0 = arith.constant 0 : i32
    %c0_i32_1 = arith.constant 0 : i32
    return %c0_i32, %c0_i32_0 : i32, i32
  }
  func.func @transform_8(%arg0: i32) -> (i32, i32) {
    %c0_i32 = arith.constant 0 : i32
    %c0_i32_0 = arith.constant 0 : i32
    %c0_i32_1 = arith.constant 0 : i32
    return %c0_i32, %c0_i32_0 : i32, i32
  }
  func.func @transform_9(%arg0: i32) -> (i32, i32) {
    %c0_i32 = arith.constant 0 : i32
    %c0_i32_0 = arith.constant 0 : i32
    %c0_i32_1 = arith.constant 0 : i32
    return %c0_i32, %c0_i32_0 : i32, i32
  }
  func.func @transform_10(%arg0: i32) -> (i32, i32) {
    %c0_i32 = arith.constant 0 : i32
    %c0_i32_0 = arith.constant 0 : i32
    %c0_i32_1 = arith.constant 0 : i32
    return %c0_i32, %c0_i32_0 : i32, i32
  }
  func.func @transform_11(%arg0: i32) -> (i32, i32) {
    %c0_i32 = arith.constant 0 : i32
    %c0_i32_0 = arith.constant 0 : i32
    %c0_i32_1 = arith.constant 0 : i32
    return %c0_i32, %c0_i32_0 : i32, i32
  }
  func.func @transform_12(%arg0: i32) -> (i32, i32) {
    %c0_i32 = arith.constant 0 : i32
    %c0_i32_0 = arith.constant 0 : i32
    %c0_i32_1 = arith.constant 0 : i32
    return %c0_i32, %c0_i32_0 : i32, i32
  }
  func.func @transform_13(%arg0: i32) -> (i32, i32) {
    %c0_i32 = arith.constant 0 : i32
    %c0_i32_0 = arith.constant 0 : i32
    %c0_i32_1 = arith.constant 0 : i32
    return %c0_i32, %c0_i32_0 : i32, i32
  }
  func.func @transform_14(%arg0: i32) -> (i32, i32) {
    %c0_i32 = arith.constant 0 : i32
    %c0_i32_0 = arith.constant 0 : i32
    %c0_i32_1 = arith.constant 0 : i32
    return %c0_i32, %c0_i32_0 : i32, i32
  }
  func.func @transform_15(%arg0: i32) -> (i32, i32) {
    %c0_i32 = arith.constant 0 : i32
    %c0_i32_0 = arith.constant 0 : i32
    %c0_i32_1 = arith.constant 0 : i32
    return %c0_i32, %c0_i32_0 : i32, i32
  }
  func.func @transform_16(%arg0: i32) -> (i32, i32) {
    %c0_i32 = arith.constant 0 : i32
    %c0_i32_0 = arith.constant 0 : i32
    %c0_i32_1 = arith.constant 0 : i32
    return %c0_i32, %c0_i32_0 : i32, i32
  }
}

</mosaic_0001>

<llo_original>
// kernel: discriminator_forward.1
$region0: #{discriminator_forward.1}
  #allocation0 [shape = 'u32[]', space=smem, size = 0x4, offset = 0x4, fixed_abs, tag = 'smem constant byte address 0x4 - core index']
  #allocation1 [shape = 'u32[144,128]{1,0:T(1,128)}', space=vmem, size = 0x12000, scoped, tag = 'internal scratch']
  #allocation2 [shape = 'f32[36,128]{1,0:T(8,128)}', space=vmem, size = 0x5000, scoped, tag = 'scratch operand']
  #allocation3 [shape = 'f32[20,128]{1,0:T(8,128)}', space=vmem, size = 0x3000, scoped, tag = 'scratch operand']
  #allocation4 [shape = 'f32[12,128]{1,0:T(8,128)}', space=vmem, size = 0x2000, scoped, tag = 'scratch operand']
  %s0 = inlined_call_operand.vmem [shape: f32[68,128], index: 0, kind: input, shape index: {}]
  %s1 = inlined_call_operand.vmem [shape: bf16[512,128], index: 1, kind: input, shape index: {}]
  %s2 = inlined_call_operand.vmem [shape: f32[1,128], index: 2, kind: input, shape index: {}]
  %s3 = inlined_call_operand.vmem [shape: f32[1,128], index: 3, kind: input, shape index: {}]
  %s4 = inlined_call_operand.vmem [shape: bf16[512,128], index: 4, kind: input, shape index: {}]
  %s5 = inlined_call_operand.vmem [shape: f32[1,128], index: 5, kind: input, shape index: {}]
  %s6 = inlined_call_operand.vmem [shape: f32[1,128], index: 6, kind: input, shape index: {}]
  %s7 = inlined_call_operand.vmem [shape: bf16[512,128], index: 7, kind: input, shape index: {}]
  %s8 = inlined_call_operand.vmem [shape: f32[1,128], index: 8, kind: input, shape index: {}]
  %s9 = inlined_call_operand.vmem [shape: f32[1,128], index: 9, kind: input, shape index: {}]
  %s10 = inlined_call_operand.vmem [shape: bf16[512,128], index: 10, kind: input, shape index: {}]
  %s11 = inlined_call_operand.vmem [shape: f32[1,128], index: 11, kind: input, shape index: {}]
  %s12 = inlined_call_operand.vmem [shape: f32[1,128], index: 12, kind: input, shape index: {}]
  %s13 = inlined_call_operand.vmem [shape: bf16[256,4], index: 13, kind: input, shape index: {}]
  %s14 = inlined_call_operand.vmem [shape: f32[1,4], index: 14, kind: input, shape index: {}]
  %s15 = inlined_call_operand.vmem [shape: s32[2,1], index: 15, kind: input, shape index: {}]
  %s16 = inlined_call_operand.vmem [shape: f32[2,1], index: 16, kind: output, shape index: {}]
  %s17 = sld [smem:[#allocation0]]
  $region74: #{discriminator_forward.1} parent=0
    _
  %s19 = ssub.s32 1, %s17
  %s20 = scalar_select 0, %s19, %s17
  // Predicated region
  $region2: #{discriminator_forward.1} parent=0 // pred_check
    _
  $region3: #{discriminator_forward.1} parent=0 // pred_check_branch
    %22 = sbr.rel (0) target = $region5
  $region4: #{discriminator_forward.1} parent=0 // pred_region
    _
  $region5: #{discriminator_forward.1} parent=0 // pred_fallthru
    _
  // Predicated region
  $region6: #{discriminator_forward.1} parent=0 // pred_check
    _
  $region7: #{discriminator_forward.1} parent=0 // pred_check_branch
    %24 = sbr.rel (0) target = $region9
  $region8: #{discriminator_forward.1} parent=0 // pred_region
    _
  $region9: #{discriminator_forward.1} parent=0 // pred_fallthru
    _
  // Predicated region
  $region10: #{discriminator_forward.1} parent=0 // pred_check
    _
  $region11: #{discriminator_forward.1} parent=0 // pred_check_branch
    %26 = sbr.rel (0) target = $region13
  $region12: #{discriminator_forward.1} parent=0 // pred_region
    _
  $region13: #{discriminator_forward.1} parent=0 // pred_fallthru
    _
  // Predicated region
  $region14: #{discriminator_forward.1} parent=0 // pred_check
    _
  $region15: #{discriminator_forward.1} parent=0 // pred_check_branch
    %28 = sbr.rel (0) target = $region17
  $region16: #{discriminator_forward.1} parent=0 // pred_region
    _
  $region17: #{discriminator_forward.1} parent=0 // pred_fallthru
    _
  // Predicated region
  $region18: #{discriminator_forward.1} parent=0 // pred_check
    _
  $region19: #{discriminator_forward.1} parent=0 // pred_check_branch
    %30 = sbr.rel (0) target = $region21
  $region20: #{discriminator_forward.1} parent=0 // pred_region
    _
  $region21: #{discriminator_forward.1} parent=0 // pred_fallthru
    _
  // Predicated region
  $region22: #{discriminator_forward.1} parent=0 // pred_check
    _
  $region23: #{discriminator_forward.1} parent=0 // pred_check_branch
    %32 = sbr.rel (0) target = $region25
  $region24: #{discriminator_forward.1} parent=0 // pred_region
    _
  $region25: #{discriminator_forward.1} parent=0 // pred_fallthru
    _
  // Predicated region
  $region26: #{discriminator_forward.1} parent=0 // pred_check
    _
  $region27: #{discriminator_forward.1} parent=0 // pred_check_branch
    %34 = sbr.rel (0) target = $region29
  $region28: #{discriminator_forward.1} parent=0 // pred_region
    _
  $region29: #{discriminator_forward.1} parent=0 // pred_fallthru
    _
  // Predicated region
  $region30: #{discriminator_forward.1} parent=0 // pred_check
    _
  $region31: #{discriminator_forward.1} parent=0 // pred_check_branch
    %36 = sbr.rel (0) target = $region33
  $region32: #{discriminator_forward.1} parent=0 // pred_region
    _
  $region33: #{discriminator_forward.1} parent=0 // pred_fallthru
    _
  // Predicated region
  $region34: #{discriminator_forward.1} parent=0 // pred_check
    _
  $region35: #{discriminator_forward.1} parent=0 // pred_check_branch
    %38 = sbr.rel (0) target = $region37
  $region36: #{discriminator_forward.1} parent=0 // pred_region
    _
  $region37: #{discriminator_forward.1} parent=0 // pred_fallthru
    _
  // Predicated region
  $region38: #{discriminator_forward.1} parent=0 // pred_check
    _
  $region39: #{discriminator_forward.1} parent=0 // pred_check_branch
    %40 = sbr.rel (0) target = $region41
  $region40: #{discriminator_forward.1} parent=0 // pred_region
    _
  $region41: #{discriminator_forward.1} parent=0 // pred_fallthru
    _
  // Predicated region
  $region42: #{discriminator_forward.1} parent=0 // pred_check
    _
  $region43: #{discriminator_forward.1} parent=0 // pred_check_branch
    %42 = sbr.rel (0) target = $region45
  $region44: #{discriminator_forward.1} parent=0 // pred_region
    _
  $region45: #{discriminator_forward.1} parent=0 // pred_fallthru
    _
  // Predicated region
  $region46: #{discriminator_forward.1} parent=0 // pred_check
    _
  $region47: #{discriminator_forward.1} parent=0 // pred_check_branch
    %44 = sbr.rel (0) target = $region49
  $region48: #{discriminator_forward.1} parent=0 // pred_region
    _
  $region49: #{discriminator_forward.1} parent=0 // pred_fallthru
    _
  // Predicated region
  $region50: #{discriminator_forward.1} parent=0 // pred_check
    _
  $region51: #{discriminator_forward.1} parent=0 // pred_check_branch
    %46 = sbr.rel (0) target = $region53
  $region52: #{discriminator_forward.1} parent=0 // pred_region
    _
  $region53: #{discriminator_forward.1} parent=0 // pred_fallthru
    _
  // Predicated region
  $region54: #{discriminator_forward.1} parent=0 // pred_check
    _
  $region55: #{discriminator_forward.1} parent=0 // pred_check_branch
    %48 = sbr.rel (0) target = $region57
  $region56: #{discriminator_forward.1} parent=0 // pred_region
    _
  $region57: #{discriminator_forward.1} parent=0 // pred_fallthru
    _
  // Predicated region
  $region58: #{discriminator_forward.1} parent=0 // pred_check
    _
  $region59: #{discriminator_forward.1} parent=0 // pred_check_branch
    %50 = sbr.rel (0) target = $region61
  $region60: #{discriminator_forward.1} parent=0 // pred_region
    _
  $region61: #{discriminator_forward.1} parent=0 // pred_fallthru
    _
  // Predicated region
  $region62: #{discriminator_forward.1} parent=0 // pred_check
    _
  $region63: #{discriminator_forward.1} parent=0 // pred_check_branch
    %52 = sbr.rel (0) target = $region65
  $region64: #{discriminator_forward.1} parent=0 // pred_region
    _
  $region65: #{discriminator_forward.1} parent=0 // pred_fallthru
    _
  %v54 = vld [vmem:[%s0] ss:$2 sm:$0xff]
  %s55 = scalar_lea.vmem %s0, 16
  %v56 = vld [vmem:[%s55] ss:$2 sm:$0xff]
  %s57 = scalar_lea.vmem %s0, 34
  %v58 = vld [vmem:[%s57] ss:$2 sm:$0xff]
  %s59 = scalar_lea.vmem %s0, 50
  %v60 = vld [vmem:[%s59] ss:$2 sm:$0xff]
  %s61 = scalar_lea.vmem %s0, 1
  %v62 = vld [vmem:[%s61] ss:$2 sm:$0xff]
  %s63 = scalar_lea.vmem %s0, 17
  %v64 = vld [vmem:[%s63] ss:$2 sm:$0xff]
  %s65 = scalar_lea.vmem %s0, 35
  %v66 = vld [vmem:[%s65] ss:$2 sm:$0xff]
  %s67 = scalar_lea.vmem %s0, 51
  %v68 = vld [vmem:[%s67] ss:$2 sm:$0xff]
  %s69 = scalar_lea.vmem %s0, 2
  %v70 = vld [vmem:[%s69] ss:$2 sm:$0xff]
  %s71 = scalar_lea.vmem %s0, 18
  %v72 = vld [vmem:[%s71] ss:$2 sm:$0xff]
  %s73 = scalar_lea.vmem %s0, 36
  %v74 = vld [vmem:[%s73] ss:$2 sm:$0xff]
  %s75 = scalar_lea.vmem %s0, 52
  %v76 = vld [vmem:[%s75] ss:$2 sm:$0xff]
  %s77 = scalar_lea.vmem %s0, 3
  %v78 = vld [vmem:[%s77] ss:$2 sm:$0xff]
  %s79 = scalar_lea.vmem %s0, 19
  %v80 = vld [vmem:[%s79] ss:$2 sm:$0xff]
  %s81 = scalar_lea.vmem %s0, 37
  %v82 = vld [vmem:[%s81] ss:$2 sm:$0xff]
  %s83 = scalar_lea.vmem %s0, 53
  %v84 = vld [vmem:[%s83] ss:$2 sm:$0xff]
  %v85 = vpack.c.bf16 %v56, %v54
  %v86 = vpack.c.bf16 %v64, %v62
  %v87 = vpack.c.bf16 %v72, %v70
  %v88 = vpack.c.bf16 %v80, %v78
  %v89 = vpack.c.bf16 %v60, %v58
  %v90 = vpack.c.bf16 %v68, %v66
  %v91 = vpack.c.bf16 %v76, %v74
  %v92 = vpack.c.bf16 %v84, %v82
  %v93 = vld [vmem:[%s1] sm:$0xf]
  %v94 = vld [vmem:[%s1 + $0x4] sm:$0xf]
  %v95 = vld [vmem:[%s1 + $0x8] sm:$0xf]
  %v96 = vld [vmem:[%s1 + $0xc] sm:$0xf]
  %v97 = vld [vmem:[%s1 + $0x10] sm:$0xf]
  %v98 = vld [vmem:[%s1 + $0x14] sm:$0xf]
  %v99 = vld [vmem:[%s1 + $0x18] sm:$0xf]
  %v100 = vld [vmem:[%s1 + $0x1c] sm:$0xf]
  %v101 = vld [vmem:[%s1 + $0x20] sm:$0xf]
  %v102 = vld [vmem:[%s1 + $0x24] sm:$0xf]
  %v103 = vld [vmem:[%s1 + $0x28] sm:$0xf]
  %v104 = vld [vmem:[%s1 + $0x2c] sm:$0xf]
  %v105 = vld [vmem:[%s1 + $0x30] sm:$0xf]
  %v106 = vld [vmem:[%s1 + $0x34] sm:$0xf]
  %v107 = vld [vmem:[%s1 + $0x38] sm:$0xf]
  %v108 = vld [vmem:[%s1 + $0x3c] sm:$0xf]
  %v109 = vld [vmem:[%s1 + $0x40] sm:$0xf]
  %v110 = vld [vmem:[%s1 + $0x44] sm:$0xf]
  %v111 = vld [vmem:[%s1 + $0x48] sm:$0xf]
  %v112 = vld [vmem:[%s1 + $0x4c] sm:$0xf]
  %v113 = vld [vmem:[%s1 + $0x50] sm:$0xf]
  %v114 = vld [vmem:[%s1 + $0x54] sm:$0xf]
  %v115 = vld [vmem:[%s1 + $0x58] sm:$0xf]
  %v116 = vld [vmem:[%s1 + $0x5c] sm:$0xf]
  %v117 = vld [vmem:[%s1 + $0x60] sm:$0xf]
  %v118 = vld [vmem:[%s1 + $0x64] sm:$0xf]
  %v119 = vld [vmem:[%s1 + $0x68] sm:$0xf]
  %v120 = vld [vmem:[%s1 + $0x6c] sm:$0xf]
  %v121 = vld [vmem:[%s1 + $0x70] sm:$0xf]
  %v122 = vld [vmem:[%s1 + $0x74] sm:$0xf]
  %v123 = vld [vmem:[%s1 + $0x78] sm:$0xf]
  %v124 = vld [vmem:[%s1 + $0x7c] sm:$0xf]
  %v125 = vld [vmem:[%s1 + $0x80] sm:$0xf]
  %v126 = vld [vmem:[%s1 + $0x84] sm:$0xf]
  %v127 = vld [vmem:[%s1 + $0x88] sm:$0xf]
  %v128 = vld [vmem:[%s1 + $0x8c] sm:$0xf]
  %v129 = vld [vmem:[%s1 + $0x90] sm:$0xf]
  %v130 = vld [vmem:[%s1 + $0x94] sm:$0xf]
  %v131 = vld [vmem:[%s1 + $0x98] sm:$0xf]
  %v132 = vld [vmem:[%s1 + $0x9c] sm:$0xf]
  %v133 = vld [vmem:[%s1 + $0xa0] sm:$0xf]
  %v134 = vld [vmem:[%s1 + $0xa4] sm:$0xf]
  %v135 = vld [vmem:[%s1 + $0xa8] sm:$0xf]
  %v136 = vld [vmem:[%s1 + $0xac] sm:$0xf]
  %v137 = vld [vmem:[%s1 + $0xb0] sm:$0xf]
  %v138 = vld [vmem:[%s1 + $0xb4] sm:$0xf]
  %v139 = vld [vmem:[%s1 + $0xb8] sm:$0xf]
  %v140 = vld [vmem:[%s1 + $0xbc] sm:$0xf]
  %v141 = vld [vmem:[%s1 + $0xc0] sm:$0xf]
  %v142 = vld [vmem:[%s1 + $0xc4] sm:$0xf]
  %v143 = vld [vmem:[%s1 + $0xc8] sm:$0xf]
  %v144 = vld [vmem:[%s1 + $0xcc] sm:$0xf]
  %v145 = vld [vmem:[%s1 + $0xd0] sm:$0xf]
  %v146 = vld [vmem:[%s1 + $0xd4] sm:$0xf]
  %v147 = vld [vmem:[%s1 + $0xd8] sm:$0xf]
  %v148 = vld [vmem:[%s1 + $0xdc] sm:$0xf]
  %v149 = vld [vmem:[%s1 + $0xe0] sm:$0xf]
  %v150 = vld [vmem:[%s1 + $0xe4] sm:$0xf]
  %v151 = vld [vmem:[%s1 + $0xe8] sm:$0xf]
  %v152 = vld [vmem:[%s1 + $0xec] sm:$0xf]
  %v153 = vld [vmem:[%s1 + $0xf0] sm:$0xf]
  %v154 = vld [vmem:[%s1 + $0xf4] sm:$0xf]
  %v155 = vld [vmem:[%s1 + $0xf8] sm:$0xf]
  %v156 = vld [vmem:[%s1 + $0xfc] sm:$0xf]
  %v221 = vunpack.c.l.b16 %v93
  %v222 = vunpack.c.l.b16 %v94
  %v223 = vunpack.c.l.b16 %v95
  %v224 = vunpack.c.l.b16 %v96
  %v225 = vunpack.c.l.b16 %v97
  %v226 = vunpack.c.l.b16 %v98
  %v227 = vunpack.c.l.b16 %v99
  %v228 = vunpack.c.l.b16 %v100
  %v229 = vunpack.c.l.b16 %v101
  %v230 = vunpack.c.l.b16 %v102
  %v231 = vunpack.c.l.b16 %v103
  %v232 = vunpack.c.l.b16 %v104
  %v233 = vunpack.c.l.b16 %v105
  %v234 = vunpack.c.l.b16 %v106
  %v235 = vunpack.c.l.b16 %v107
  %v236 = vunpack.c.l.b16 %v108
  %v237 = vunpack.c.l.b16 %v109
  %v238 = vunpack.c.l.b16 %v110
  %v239 = vunpack.c.l.b16 %v111
  %v240 = vunpack.c.l.b16 %v112
  %v241 = vunpack.c.l.b16 %v113
  %v242 = vunpack.c.l.b16 %v114
  %v243 = vunpack.c.l.b16 %v115
  %v244 = vunpack.c.l.b16 %v116
  %v245 = vunpack.c.l.b16 %v117
  %v246 = vunpack.c.l.b16 %v118
  %v247 = vunpack.c.l.b16 %v119
  %v248 = vunpack.c.l.b16 %v120
  %v249 = vunpack.c.l.b16 %v121
  %v250 = vunpack.c.l.b16 %v122
  %v251 = vunpack.c.l.b16 %v123
  %v252 = vunpack.c.l.b16 %v124
  %v253 = vunpack.c.l.b16 %v125
  %v254 = vunpack.c.l.b16 %v126
  %v255 = vunpack.c.l.b16 %v127
  %v256 = vunpack.c.l.b16 %v128
  %v257 = vunpack.c.l.b16 %v129
  %v258 = vunpack.c.l.b16 %v130
  %v259 = vunpack.c.l.b16 %v131
  %v260 = vunpack.c.l.b16 %v132
  %v261 = vunpack.c.l.b16 %v133
  %v262 = vunpack.c.l.b16 %v134
  %v263 = vunpack.c.l.b16 %v135
  %v264 = vunpack.c.l.b16 %v136
  %v265 = vunpack.c.l.b16 %v137
  %v266 = vunpack.c.l.b16 %v138
  %v267 = vunpack.c.l.b16 %v139
  %v268 = vunpack.c.l.b16 %v140
  %v269 = vunpack.c.l.b16 %v141
  %v270 = vunpack.c.l.b16 %v142
  %v271 = vunpack.c.l.b16 %v143
  %v272 = vunpack.c.l.b16 %v144
  %v273 = vunpack.c.l.b16 %v145
  %v274 = vunpack.c.l.b16 %v146
  %v275 = vunpack.c.l.b16 %v147
  %v276 = vunpack.c.l.b16 %v148
  %v277 = vunpack.c.l.b16 %v149
  %v278 = vunpack.c.l.b16 %v150
  %v279 = vunpack.c.l.b16 %v151
  %v280 = vunpack.c.l.b16 %v152
  %v281 = vunpack.c.l.b16 %v153
  %v282 = vunpack.c.l.b16 %v154
  %v283 = vunpack.c.l.b16 %v155
  %v284 = vunpack.c.l.b16 %v156
  %v285 = vpack.c.b16 %v222, %v221
  %v286 = vpack.c.b16 %v224, %v223
  %v287 = vpack.c.b16 %v226, %v225
  %v288 = vpack.c.b16 %v228, %v227
  %v289 = vpack.c.b16 %v230, %v229
  %v290 = vpack.c.b16 %v232, %v231
  %v291 = vpack.c.b16 %v234, %v233
  %v292 = vpack.c.b16 %v236, %v235
  %v293 = vpack.c.b16 %v238, %v237
  %v294 = vpack.c.b16 %v240, %v239
  %v295 = vpack.c.b16 %v242, %v241
  %v296 = vpack.c.b16 %v244, %v243
  %v297 = vpack.c.b16 %v246, %v245
  %v298 = vpack.c.b16 %v248, %v247
  %v299 = vpack.c.b16 %v250, %v249
  %v300 = vpack.c.b16 %v252, %v251
  %v301 = vpack.c.b16 %v254, %v253
  %v302 = vpack.c.b16 %v256, %v255
  %v303 = vpack.c.b16 %v258, %v257
  %v304 = vpack.c.b16 %v260, %v259
  %v305 = vpack.c.b16 %v262, %v261
  %v306 = vpack.c.b16 %v264, %v263
  %v307 = vpack.c.b16 %v266, %v265
  %v308 = vpack.c.b16 %v268, %v267
  %v309 = vpack.c.b16 %v270, %v269
  %v310 = vpack.c.b16 %v272, %v271
  %v311 = vpack.c.b16 %v274, %v273
  %v312 = vpack.c.b16 %v276, %v275
  %v313 = vpack.c.b16 %v278, %v277
  %v314 = vpack.c.b16 %v280, %v279
  %v315 = vpack.c.b16 %v282, %v281
  %v316 = vpack.c.b16 %v284, %v283
  %349 = vmatprep.subr.bf16.mxu0 0
  %350 = vmatpush1.bf16.msra.mxu0 %v285
  %351 = vmatprep.subr.bf16.mxu0 0
  %352 = vmatpush1.bf16.msra.mxu0 %v286
  %353 = vmatprep.subr.bf16.mxu0 0
  %354 = vmatpush1.bf16.msra.mxu0 %v287
  %355 = vmatprep.subr.bf16.mxu0 0
  %356 = vmatpush1.bf16.msra.mxu0 %v288
  %357 = vmatprep.subr.bf16.mxu0 0
  %358 = vmatpush1.bf16.msra.mxu0 %v289
  %359 = vmatprep.subr.bf16.mxu0 0
  %360 = vmatpush1.bf16.msra.mxu0 %v290
  %361 = vmatprep.subr.bf16.mxu0 0
  %362 = vmatpush1.bf16.msra.mxu0 %v291
  %363 = vmatprep.subr.bf16.mxu0 0
  %364 = vmatpush1.bf16.msra.mxu0 %v292
  %365 = vmatprep.subr.bf16.mxu0 0
  %366 = vmatpush1.bf16.msra.mxu0 %v293
  %367 = vmatprep.subr.bf16.mxu0 0
  %368 = vmatpush1.bf16.msra.mxu0 %v294
  %369 = vmatprep.subr.bf16.mxu0 0
  %370 = vmatpush1.bf16.msra.mxu0 %v295
  %371 = vmatprep.subr.bf16.mxu0 0
  %372 = vmatpush1.bf16.msra.mxu0 %v296
  %373 = vmatprep.subr.bf16.mxu0 0
  %374 = vmatpush1.bf16.msra.mxu0 %v297
  %375 = vmatprep.subr.bf16.mxu0 0
  %376 = vmatpush1.bf16.msra.mxu0 %v298
  %377 = vmatprep.subr.bf16.mxu0 0
  %378 = vmatpush1.bf16.msra.mxu0 %v299
  %379 = vmatprep.subr.bf16.mxu0 0
  %380 = vmatpush1.bf16.msra.mxu0 %v300
  %381 = vmatprep.mubr.bf16.mxu0 %v86
  %382 = vmatmul.mubr.bf16.gmra.mrb[0].mxu0 %v85
  %v383 = vpop.f32.mrb[0].mxu0
  %v384 = vadd.f32 0.0, %v383
  %v385 = vpop.f32.mrb[0].mxu0
  %v386 = vpop.f32.mrb[0].mxu0
  %v387 = vadd.f32 0.0, %v386
  %v388 = vpop.f32.mrb[0].mxu0
  %389 = vmatprep.mubr.bf16.mxu0 %v90
  %390 = vmatmul.mubr.bf16.gmra.mrb[0].mxu0 %v89
  %v391 = vpop.f32.mrb[0].mxu0
  %v392 = vadd.f32 0.0, %v391
  %v393 = vpop.f32.mrb[0].mxu0
  %v394 = vpop.f32.mrb[0].mxu0
  %v395 = vadd.f32 0.0, %v394
  %v396 = vpop.f32.mrb[0].mxu0
  %397 = vdwg.mxu0
  %398 = vmatprep.subr.bf16.mxu0 0
  %399 = vmatpush1.bf16.msra.mxu0 %v301
  %400 = vmatprep.subr.bf16.mxu0 0
  %401 = vmatpush1.bf16.msra.mxu0 %v302
  %402 = vmatprep.subr.bf16.mxu0 0
  %403 = vmatpush1.bf16.msra.mxu0 %v303
  %404 = vmatprep.subr.bf16.mxu0 0
  %405 = vmatpush1.bf16.msra.mxu0 %v304
  %406 = vmatprep.subr.bf16.mxu0 0
  %407 = vmatpush1.bf16.msra.mxu0 %v305
  %408 = vmatprep.subr.bf16.mxu0 0
  %409 = vmatpush1.bf16.msra.mxu0 %v306
  %410 = vmatprep.subr.bf16.mxu0 0
  %411 = vmatpush1.bf16.msra.mxu0 %v307
  %412 = vmatprep.subr.bf16.mxu0 0
  %413 = vmatpush1.bf16.msra.mxu0 %v308
  %414 = vmatprep.subr.bf16.mxu0 0
  %415 = vmatpush1.bf16.msra.mxu0 %v309
  %416 = vmatprep.subr.bf16.mxu0 0
  %417 = vmatpush1.bf16.msra.mxu0 %v310
  %418 = vmatprep.subr.bf16.mxu0 0
  %419 = vmatpush1.bf16.msra.mxu0 %v311
  %420 = vmatprep.subr.bf16.mxu0 0
  %421 = vmatpush1.bf16.msra.mxu0 %v312
  %422 = vmatprep.subr.bf16.mxu0 0
  %423 = vmatpush1.bf16.msra.mxu0 %v313
  %424 = vmatprep.subr.bf16.mxu0 0
  %425 = vmatpush1.bf16.msra.mxu0 %v314
  %426 = vmatprep.subr.bf16.mxu0 0
  %427 = vmatpush1.bf16.msra.mxu0 %v315
  %428 = vmatprep.subr.bf16.mxu0 0
  %429 = vmatpush1.bf16.msra.mxu0 %v316
  %430 = vmatprep.mubr.bf16.mxu0 %v88
  %431 = vmatmul.mubr.bf16.gmra.mrb[0].mxu0 %v87
  %v432 = vpop.f32.mrb[0].mxu0
  %v433 = vadd.f32 %v384, %v432
  %v434 = vpop.f32.mrb[0].mxu0
  %v435 = vpop.f32.mrb[0].mxu0
  %v436 = vadd.f32 %v387, %v435
  %v437 = vpop.f32.mrb[0].mxu0
  %438 = vmatprep.mubr.bf16.mxu0 %v92
  %439 = vmatmul.mubr.bf16.gmra.mrb[0].mxu0 %v91
  %v440 = vpop.f32.mrb[0].mxu0
  %v441 = vadd.f32 %v392, %v440
  %v442 = vpop.f32.mrb[0].mxu0
  %v443 = vpop.f32.mrb[0].mxu0
  %v444 = vadd.f32 %v395, %v443
  %v445 = vpop.f32.mrb[0].mxu0
  %446 = vdwg.mxu0
  %v447 = vadd.f32 %v433, %v436
  %v448 = vadd.f32 %v447, %v441
  %v449 = vadd.f32 %v448, %v444
  %v450 = vrot.slane %v449, 4
  %v451 = vadd.f32 %v449, %v450
  %v452 = vrot.slane %v451, 2
  %v453 = vadd.f32 %v451, %v452
  %v454 = vrot.slane %v453, 1
  %v455 = vadd.f32 %v453, %v454
  %v456 = vmul.f32 %v433, %v433
  %v457 = vmul.f32 %v436, %v436
  %v458 = vmul.f32 %v441, %v441
  %v459 = vmul.f32 %v444, %v444
  %v460 = vadd.f32 %v456, %v457
  %v461 = vadd.f32 %v460, %v458
  %v462 = vadd.f32 %v461, %v459
  %v463 = vrot.slane %v462, 4
  %v464 = vadd.f32 %v462, %v463
  %v465 = vrot.slane %v464, 2
  %v466 = vadd.f32 %v464, %v465
  %v467 = vrot.slane %v466, 1
  %v468 = vadd.f32 %v466, %v467
  %vm469 = vcmask 1040384
  %v470 = vsel %vm469, %v455, %v468
  %471 = vrot.lane.b32.xlu0 %v470, 8
  %v472 = vpop.permute.xlu0 %471
  %v473 = vadd.f32 %v470, %v472
  %474 = vrot.lane.b32.xlu0 %v473, 16
  %v475 = vpop.permute.xlu0 %474
  %v476 = vadd.f32 %v473, %v475
  %477 = vrot.lane.b32.xlu0 %v476, 32
  %v478 = vpop.permute.xlu0 %477
  %v479 = vadd.f32 %v476, %v478
  %480 = vrot.lane.b32.xlu0 %v479, 64
  %v481 = vpop.permute.xlu0 %480
  %v482 = vadd.f32 %v479, %v481
  %v483 = vmul.f32 %v482, 0.001953125
  %v484 = vmul.f32 %v483, %v483
  %v486 = vrot.slane %v484, 7
  %v488 = vsub.f32 %v483, %v486
  %v489 = vmax.f32 %v488, 0.0
  %v490 = vld [vmem:[%s2] sm:$0x1]
  %v491 = vadd.f32 %v489, 1e-05
  %v492 = vrsqrt.pop %v491
  %v495 = vunpack.c.l.s4 1966171168
  %v496 = vunpack.c.0.s8 %v495
  %v497 = vlaneseq
  %v498 = vshrl.u32 %v497, 7
  %v499 = vsub.s32 %v496, %v498
  %v500 = vrot.slane %v492, %v499
  %v501 = vcombine.high %v500, %v500
  %v503 = vunpack.c.l.s4 1966171168
  %v504 = vunpack.c.0.s8 %v503
  %v505 = vlaneseq
  %v506 = vshrl.u32 %v505, 7
  %v507 = vsub.s32 %v504, %v506
  %v508 = vrot.slane %v501, %v507
  %v510 = vmul.f32 %v490, %v508
  %v511 = vld [vmem:[%s3] sm:$0x1]
  %v512 = vmul.f32 %v483, %v510
  %v513 = vsub.f32 %v511, %v512
  %v515 = vlaneseq
  %v516 = vshrl.u32 %v515, 7
  %v517 = vsub.s32 0, %v516
  %v518 = vrot.slane %v510, %v517
  %v520 = vmul.f32 %v433, %v518
  %v521 = vmul.f32 %v436, %v518
  %v522 = vmul.f32 %v441, %v518
  %v523 = vmul.f32 %v444, %v518
  %v525 = vlaneseq
  %v526 = vshrl.u32 %v525, 7
  %v527 = vsub.s32 0, %v526
  %v528 = vrot.slane %v513, %v527
  %v530 = vadd.f32 %v520, %v528
  %v531 = vadd.f32 %v521, %v528
  %v532 = vadd.f32 %v522, %v528
  %v533 = vadd.f32 %v523, %v528
  %vm534 = vcmp.gt.f32.partialorder %v530, 0.0
  %vm535 = vcmp.gt.f32.partialorder %v531, 0.0
  %vm536 = vcmp.gt.f32.partialorder %v532, 0.0
  %vm537 = vcmp.gt.f32.partialorder %v533, 0.0
  %v538 = vmul.f32 %v530, 0.2
  %v539 = vmul.f32 %v531, 0.2
  %v540 = vmul.f32 %v532, 0.2
  %v541 = vmul.f32 %v533, 0.2
  %v542 = vsel %vm534, %v530, %v538
  %v543 = vsel %vm535, %v531, %v539
  %v544 = vsel %vm536, %v532, %v540
  %v545 = vsel %vm537, %v533, %v541
  %546 = vst [vmem:[#allocation2] sm:$0xff] 0.0
  %547 = vst [vmem:[#allocation2 + $0x8] sm:$0xff] 0.0
  %548 = vst [vmem:[#allocation2 + $0x10] sm:$0xff] 0.0
  %549 = vst [vmem:[#allocation2 + $0x18] sm:$0xff] 0.0
  %550 = vst [vmem:[#allocation2 + $0x20] sm:$0xf] 0.0
  %551 = vst [vmem:[#allocation2 + $0x1] sm:$0xff] %v542
  %552 = vst [vmem:[#allocation2 + $0x9] sm:$0xff] %v543
  %553 = vst [vmem:[#allocation2 + $0x13] sm:$0xff] %v544
  %554 = vst [vmem:[#allocation2 + $0x1b] sm:$0xff] %v545
  %v555 = vld [vmem:[#allocation2] ss:$2 sm:$0xff]
  %s556 = scalar_lea.vmem [#allocation2], 18
  %v557 = vld [vmem:[%s556] ss:$2 sm:$0xff]
  %s558 = scalar_lea.vmem [#allocation2], 1
  %v559 = vld [vmem:[%s558] ss:$2 sm:$0xff]
  %s560 = scalar_lea.vmem [#allocation2], 19
  %v561 = vld [vmem:[%s560] ss:$2 sm:$0xff]
  %s562 = scalar_lea.vmem [#allocation2], 2
  %v563 = vld [vmem:[%s562] ss:$2 sm:$0xff]
  %s564 = scalar_lea.vmem [#allocation2], 20
  %v565 = vld [vmem:[%s564] ss:$2 sm:$0xff]
  %s566 = scalar_lea.vmem [#allocation2], 3
  %v567 = vld [vmem:[%s566] ss:$2 sm:$0xff]
  %s568 = scalar_lea.vmem [#allocation2], 21
  %v569 = vld [vmem:[%s568] ss:$2 sm:$0xff]
  %v570 = vpack.c.bf16 %v557, %v555
  %v571 = vpack.c.bf16 %v561, %v559
  %v572 = vpack.c.bf16 %v565, %v563
  %v573 = vpack.c.bf16 %v569, %v567
  %v574 = vld [vmem:[%s4] sm:$0xf]
  %v575 = vld [vmem:[%s4 + $0x4] sm:$0xf]
  %v576 = vld [vmem:[%s4 + $0x8] sm:$0xf]
  %v577 = vld [vmem:[%s4 + $0xc] sm:$0xf]
  %v578 = vld [vmem:[%s4 + $0x10] sm:$0xf]
  %v579 = vld [vmem:[%s4 + $0x14] sm:$0xf]
  %v580 = vld [vmem:[%s4 + $0x18] sm:$0xf]
  %v581 = vld [vmem:[%s4 + $0x1c] sm:$0xf]
  %v582 = vld [vmem:[%s4 + $0x20] sm:$0xf]
  %v583 = vld [vmem:[%s4 + $0x24] sm:$0xf]
  %v584 = vld [vmem:[%s4 + $0x28] sm:$0xf]
  %v585 = vld [vmem:[%s4 + $0x2c] sm:$0xf]
  %v586 = vld [vmem:[%s4 + $0x30] sm:$0xf]
  %v587 = vld [vmem:[%s4 + $0x34] sm:$0xf]
  %v588 = vld [vmem:[%s4 + $0x38] sm:$0xf]
  %v589 = vld [vmem:[%s4 + $0x3c] sm:$0xf]
  %v590 = vld [vmem:[%s4 + $0x40] sm:$0xf]
  %v591 = vld [vmem:[%s4 + $0x44] sm:$0xf]
  %v592 = vld [vmem:[%s4 + $0x48] sm:$0xf]
  %v593 = vld [vmem:[%s4 + $0x4c] sm:$0xf]
  %v594 = vld [vmem:[%s4 + $0x50] sm:$0xf]
  %v595 = vld [vmem:[%s4 + $0x54] sm:$0xf]
  %v596 = vld [vmem:[%s4 + $0x58] sm:$0xf]
  %v597 = vld [vmem:[%s4 + $0x5c] sm:$0xf]
  %v598 = vld [vmem:[%s4 + $0x60] sm:$0xf]
  %v599 = vld [vmem:[%s4 + $0x64] sm:$0xf]
  %v600 = vld [vmem:[%s4 + $0x68] sm:$0xf]
  %v601 = vld [vmem:[%s4 + $0x6c] sm:$0xf]
  %v602 = vld [vmem:[%s4 + $0x70] sm:$0xf]
  %v603 = vld [vmem:[%s4 + $0x74] sm:$0xf]
  %v604 = vld [vmem:[%s4 + $0x78] sm:$0xf]
  %v605 = vld [vmem:[%s4 + $0x7c] sm:$0xf]
  %v606 = vld [vmem:[%s4 + $0x80] sm:$0xf]
  %v607 = vld [vmem:[%s4 + $0x84] sm:$0xf]
  %v608 = vld [vmem:[%s4 + $0x88] sm:$0xf]
  %v609 = vld [vmem:[%s4 + $0x8c] sm:$0xf]
  %v610 = vld [vmem:[%s4 + $0x90] sm:$0xf]
  %v611 = vld [vmem:[%s4 + $0x94] sm:$0xf]
  %v612 = vld [vmem:[%s4 + $0x98] sm:$0xf]
  %v613 = vld [vmem:[%s4 + $0x9c] sm:$0xf]
  %v614 = vld [vmem:[%s4 + $0xa0] sm:$0xf]
  %v615 = vld [vmem:[%s4 + $0xa4] sm:$0xf]
  %v616 = vld [vmem:[%s4 + $0xa8] sm:$0xf]
  %v617 = vld [vmem:[%s4 + $0xac] sm:$0xf]
  %v618 = vld [vmem:[%s4 + $0xb0] sm:$0xf]
  %v619 = vld [vmem:[%s4 + $0xb4] sm:$0xf]
  %v620 = vld [vmem:[%s4 + $0xb8] sm:$0xf]
  %v621 = vld [vmem:[%s4 + $0xbc] sm:$0xf]
  %v622 = vld [vmem:[%s4 + $0xc0] sm:$0xf]
  %v623 = vld [vmem:[%s4 + $0xc4] sm:$0xf]
  %v624 = vld [vmem:[%s4 + $0xc8] sm:$0xf]
  %v625 = vld [vmem:[%s4 + $0xcc] sm:$0xf]
  %v626 = vld [vmem:[%s4 + $0xd0] sm:$0xf]
  %v627 = vld [vmem:[%s4 + $0xd4] sm:$0xf]
  %v628 = vld [vmem:[%s4 + $0xd8] sm:$0xf]
  %v629 = vld [vmem:[%s4 + $0xdc] sm:$0xf]
  %v630 = vld [vmem:[%s4 + $0xe0] sm:$0xf]
  %v631 = vld [vmem:[%s4 + $0xe4] sm:$0xf]
  %v632 = vld [vmem:[%s4 + $0xe8] sm:$0xf]
  %v633 = vld [vmem:[%s4 + $0xec] sm:$0xf]
  %v634 = vld [vmem:[%s4 + $0xf0] sm:$0xf]
  %v635 = vld [vmem:[%s4 + $0xf4] sm:$0xf]
  %v636 = vld [vmem:[%s4 + $0xf8] sm:$0xf]
  %v637 = vld [vmem:[%s4 + $0xfc] sm:$0xf]
  %v702 = vunpack.c.l.b16 %v574
  %v703 = vunpack.c.l.b16 %v575
  %v704 = vunpack.c.l.b16 %v576
  %v705 = vunpack.c.l.b16 %v577
  %v706 = vunpack.c.l.b16 %v578
  %v707 = vunpack.c.l.b16 %v579
  %v708 = vunpack.c.l.b16 %v580
  %v709 = vunpack.c.l.b16 %v581
  %v710 = vunpack.c.l.b16 %v582
  %v711 = vunpack.c.l.b16 %v583
  %v712 = vunpack.c.l.b16 %v584
  %v713 = vunpack.c.l.b16 %v585
  %v714 = vunpack.c.l.b16 %v586
  %v715 = vunpack.c.l.b16 %v587
  %v716 = vunpack.c.l.b16 %v588
  %v717 = vunpack.c.l.b16 %v589
  %v718 = vunpack.c.l.b16 %v590
  %v719 = vunpack.c.l.b16 %v591
  %v720 = vunpack.c.l.b16 %v592
  %v721 = vunpack.c.l.b16 %v593
  %v722 = vunpack.c.l.b16 %v594
  %v723 = vunpack.c.l.b16 %v595
  %v724 = vunpack.c.l.b16 %v596
  %v725 = vunpack.c.l.b16 %v597
  %v726 = vunpack.c.l.b16 %v598
  %v727 = vunpack.c.l.b16 %v599
  %v728 = vunpack.c.l.b16 %v600
  %v729 = vunpack.c.l.b16 %v601
  %v730 = vunpack.c.l.b16 %v602
  %v731 = vunpack.c.l.b16 %v603
  %v732 = vunpack.c.l.b16 %v604
  %v733 = vunpack.c.l.b16 %v605
  %v734 = vunpack.c.l.b16 %v606
  %v735 = vunpack.c.l.b16 %v607
  %v736 = vunpack.c.l.b16 %v608
  %v737 = vunpack.c.l.b16 %v609
  %v738 = vunpack.c.l.b16 %v610
  %v739 = vunpack.c.l.b16 %v611
  %v740 = vunpack.c.l.b16 %v612
  %v741 = vunpack.c.l.b16 %v613
  %v742 = vunpack.c.l.b16 %v614
  %v743 = vunpack.c.l.b16 %v615
  %v744 = vunpack.c.l.b16 %v616
  %v745 = vunpack.c.l.b16 %v617
  %v746 = vunpack.c.l.b16 %v618
  %v747 = vunpack.c.l.b16 %v619
  %v748 = vunpack.c.l.b16 %v620
  %v749 = vunpack.c.l.b16 %v621
  %v750 = vunpack.c.l.b16 %v622
  %v751 = vunpack.c.l.b16 %v623
  %v752 = vunpack.c.l.b16 %v624
  %v753 = vunpack.c.l.b16 %v625
  %v754 = vunpack.c.l.b16 %v626
  %v755 = vunpack.c.l.b16 %v627
  %v756 = vunpack.c.l.b16 %v628
  %v757 = vunpack.c.l.b16 %v629
  %v758 = vunpack.c.l.b16 %v630
  %v759 = vunpack.c.l.b16 %v631
  %v760 = vunpack.c.l.b16 %v632
  %v761 = vunpack.c.l.b16 %v633
  %v762 = vunpack.c.l.b16 %v634
  %v763 = vunpack.c.l.b16 %v635
  %v764 = vunpack.c.l.b16 %v636
  %v765 = vunpack.c.l.b16 %v637
  %v766 = vpack.c.b16 %v703, %v702
  %v767 = vpack.c.b16 %v705, %v704
  %v768 = vpack.c.b16 %v707, %v706
  %v769 = vpack.c.b16 %v709, %v708
  %v770 = vpack.c.b16 %v711, %v710
  %v771 = vpack.c.b16 %v713, %v712
  %v772 = vpack.c.b16 %v715, %v714
  %v773 = vpack.c.b16 %v717, %v716
  %v774 = vpack.c.b16 %v719, %v718
  %v775 = vpack.c.b16 %v721, %v720
  %v776 = vpack.c.b16 %v723, %v722
  %v777 = vpack.c.b16 %v725, %v724
  %v778 = vpack.c.b16 %v727, %v726
  %v779 = vpack.c.b16 %v729, %v728
  %v780 = vpack.c.b16 %v731, %v730
  %v781 = vpack.c.b16 %v733, %v732
  %v782 = vpack.c.b16 %v735, %v734
  %v783 = vpack.c.b16 %v737, %v736
  %v784 = vpack.c.b16 %v739, %v738
  %v785 = vpack.c.b16 %v741, %v740
  %v786 = vpack.c.b16 %v743, %v742
  %v787 = vpack.c.b16 %v745, %v744
  %v788 = vpack.c.b16 %v747, %v746
  %v789 = vpack.c.b16 %v749, %v748
  %v790 = vpack.c.b16 %v751, %v750
  %v791 = vpack.c.b16 %v753, %v752
  %v792 = vpack.c.b16 %v755, %v754
  %v793 = vpack.c.b16 %v757, %v756
  %v794 = vpack.c.b16 %v759, %v758
  %v795 = vpack.c.b16 %v761, %v760
  %v796 = vpack.c.b16 %v763, %v762
  %v797 = vpack.c.b16 %v765, %v764
  %830 = vmatprep.subr.bf16.mxu0 0
  %831 = vmatpush1.bf16.msra.mxu0 %v766
  %832 = vmatprep.subr.bf16.mxu0 0
  %833 = vmatpush1.bf16.msra.mxu0 %v767
  %834 = vmatprep.subr.bf16.mxu0 0
  %835 = vmatpush1.bf16.msra.mxu0 %v768
  %836 = vmatprep.subr.bf16.mxu0 0
  %837 = vmatpush1.bf16.msra.mxu0 %v769
  %838 = vmatprep.subr.bf16.mxu0 0
  %839 = vmatpush1.bf16.msra.mxu0 %v770
  %840 = vmatprep.subr.bf16.mxu0 0
  %841 = vmatpush1.bf16.msra.mxu0 %v771
  %842 = vmatprep.subr.bf16.mxu0 0
  %843 = vmatpush1.bf16.msra.mxu0 %v772
  %844 = vmatprep.subr.bf16.mxu0 0
  %845 = vmatpush1.bf16.msra.mxu0 %v773
  %846 = vmatprep.subr.bf16.mxu0 0
  %847 = vmatpush1.bf16.msra.mxu0 %v774
  %848 = vmatprep.subr.bf16.mxu0 0
  %849 = vmatpush1.bf16.msra.mxu0 %v775
  %850 = vmatprep.subr.bf16.mxu0 0
  %851 = vmatpush1.bf16.msra.mxu0 %v776
  %852 = vmatprep.subr.bf16.mxu0 0
  %853 = vmatpush1.bf16.msra.mxu0 %v777
  %854 = vmatprep.subr.bf16.mxu0 0
  %855 = vmatpush1.bf16.msra.mxu0 %v778
  %856 = vmatprep.subr.bf16.mxu0 0
  %857 = vmatpush1.bf16.msra.mxu0 %v779
  %858 = vmatprep.subr.bf16.mxu0 0
  %859 = vmatpush1.bf16.msra.mxu0 %v780
  %860 = vmatprep.subr.bf16.mxu0 0
  %861 = vmatpush1.bf16.msra.mxu0 %v781
  %862 = vmatprep.mubr.bf16.mxu0 %v571
  %863 = vmatmul.mubr.bf16.gmra.mrb[0].mxu0 %v570
  %v864 = vpop.f32.mrb[0].mxu0
  %v865 = vadd.f32 0.0, %v864
  %v866 = vpop.f32.mrb[0].mxu0
  %v867 = vpop.f32.mrb[0].mxu0
  %v868 = vadd.f32 0.0, %v867
  %v869 = vpop.f32.mrb[0].mxu0
  %870 = vdwg.mxu0
  %871 = vmatprep.subr.bf16.mxu0 0
  %872 = vmatpush1.bf16.msra.mxu0 %v782
  %873 = vmatprep.subr.bf16.mxu0 0
  %874 = vmatpush1.bf16.msra.mxu0 %v783
  %875 = vmatprep.subr.bf16.mxu0 0
  %876 = vmatpush1.bf16.msra.mxu0 %v784
  %877 = vmatprep.subr.bf16.mxu0 0
  %878 = vmatpush1.bf16.msra.mxu0 %v785
  %879 = vmatprep.subr.bf16.mxu0 0
  %880 = vmatpush1.bf16.msra.mxu0 %v786
  %881 = vmatprep.subr.bf16.mxu0 0
  %882 = vmatpush1.bf16.msra.mxu0 %v787
  %883 = vmatprep.subr.bf16.mxu0 0
  %884 = vmatpush1.bf16.msra.mxu0 %v788
  %885 = vmatprep.subr.bf16.mxu0 0
  %886 = vmatpush1.bf16.msra.mxu0 %v789
  %887 = vmatprep.subr.bf16.mxu0 0
  %888 = vmatpush1.bf16.msra.mxu0 %v790
  %889 = vmatprep.subr.bf16.mxu0 0
  %890 = vmatpush1.bf16.msra.mxu0 %v791
  %891 = vmatprep.subr.bf16.mxu0 0
  %892 = vmatpush1.bf16.msra.mxu0 %v792
  %893 = vmatprep.subr.bf16.mxu0 0
  %894 = vmatpush1.bf16.msra.mxu0 %v793
  %895 = vmatprep.subr.bf16.mxu0 0
  %896 = vmatpush1.bf16.msra.mxu0 %v794
  %897 = vmatprep.subr.bf16.mxu0 0
  %898 = vmatpush1.bf16.msra.mxu0 %v795
  %899 = vmatprep.subr.bf16.mxu0 0
  %900 = vmatpush1.bf16.msra.mxu0 %v796
  %901 = vmatprep.subr.bf16.mxu0 0
  %902 = vmatpush1.bf16.msra.mxu0 %v797
  %903 = vmatprep.mubr.bf16.mxu0 %v573
  %904 = vmatmul.mubr.bf16.gmra.mrb[0].mxu0 %v572
  %v905 = vpop.f32.mrb[0].mxu0
  %v906 = vadd.f32 %v865, %v905
  %v907 = vpop.f32.mrb[0].mxu0
  %v908 = vpop.f32.mrb[0].mxu0
  %v909 = vadd.f32 %v868, %v908
  %v910 = vpop.f32.mrb[0].mxu0
  %911 = vdwg.mxu0
  %v912 = vadd.f32 %v906, %v909
  %v913 = vrot.slane %v912, 4
  %v914 = vadd.f32 %v912, %v913
  %v915 = vrot.slane %v914, 2
  %v916 = vadd.f32 %v914, %v915
  %v917 = vrot.slane %v916, 1
  %v918 = vadd.f32 %v916, %v917
  %v919 = vmul.f32 %v906, %v906
  %v920 = vmul.f32 %v909, %v909
  %v921 = vadd.f32 %v919, %v920
  %v922 = vrot.slane %v921, 4
  %v923 = vadd.f32 %v921, %v922
  %v924 = vrot.slane %v923, 2
  %v925 = vadd.f32 %v923, %v924
  %v926 = vrot.slane %v925, 1
  %v927 = vadd.f32 %v925, %v926
  %v928 = vsel %vm469, %v918, %v927
  %929 = vrot.lane.b32.xlu0 %v928, 16
  %v930 = vpop.permute.xlu0 %929
  %v931 = vadd.f32 %v928, %v930
  %932 = vrot.lane.b32.xlu0 %v931, 32
  %v933 = vpop.permute.xlu0 %932
  %v934 = vadd.f32 %v931, %v933
  %935 = vrot.lane.b32.xlu0 %v934, 64
  %v936 = vpop.permute.xlu0 %935
  %v937 = vadd.f32 %v934, %v936
  %v938 = vmul.f32 %v937, 0.0078125
  %v939 = vmul.f32 %v938, %v938
  %v941 = vrot.slane %v939, 7
  %v943 = vsub.f32 %v938, %v941
  %v944 = vmax.f32 %v943, 0.0
  %v945 = vld [vmem:[%s5] sm:$0x1]
  %v946 = vadd.f32 %v944, 1e-05
  %v947 = vrsqrt.pop %v946
  %v950 = vunpack.c.l.s4 1966171168
  %v951 = vunpack.c.0.s8 %v950
  %v952 = vlaneseq
  %v953 = vshrl.u32 %v952, 7
  %v954 = vsub.s32 %v951, %v953
  %v955 = vrot.slane %v947, %v954
  %v956 = vcombine.high %v955, %v955
  %v958 = vunpack.c.l.s4 1966171168
  %v959 = vunpack.c.0.s8 %v958
  %v960 = vlaneseq
  %v961 = vshrl.u32 %v960, 7
  %v962 = vsub.s32 %v959, %v961
  %v963 = vrot.slane %v956, %v962
  %v965 = vmul.f32 %v945, %v963
  %v966 = vld [vmem:[%s6] sm:$0x1]
  %v967 = vmul.f32 %v938, %v965
  %v968 = vsub.f32 %v966, %v967
  %v970 = vlaneseq
  %v971 = vshrl.u32 %v970, 7
  %v972 = vsub.s32 0, %v971
  %v973 = vrot.slane %v965, %v972
  %v975 = vmul.f32 %v906, %v973
  %v976 = vmul.f32 %v909, %v973
  %v978 = vlaneseq
  %v979 = vshrl.u32 %v978, 7
  %v980 = vsub.s32 0, %v979
  %v981 = vrot.slane %v968, %v980
  %v983 = vadd.f32 %v975, %v981
  %v984 = vadd.f32 %v976, %v981
  %vm985 = vcmp.gt.f32.partialorder %v983, 0.0
  %vm986 = vcmp.gt.f32.partialorder %v984, 0.0
  %v987 = vmul.f32 %v983, 0.2
  %v988 = vmul.f32 %v984, 0.2
  %v989 = vsel %vm985, %v983, %v987
  %v990 = vsel %vm986, %v984, %v988
  %991 = vst [vmem:[#allocation3] sm:$0xff] 0.0
  %992 = vst [vmem:[#allocation3 + $0x8] sm:$0xff] 0.0
  %993 = vst [vmem:[#allocation3 + $0x10] sm:$0xf] 0.0
  %994 = vst [vmem:[#allocation3 + $0x1] sm:$0xff] %v989
  %995 = vst [vmem:[#allocation3 + $0xb] sm:$0xff] %v990
  %v996 = vld [vmem:[#allocation3] ss:$2 sm:$0xf]
  %s997 = scalar_lea.vmem [#allocation3], 10
  %v998 = vld [vmem:[%s997] ss:$2 sm:$0xf]
  %v1000 = vrot.slane %v998, 4
  %vm1002 = vcmask 1043456
  %v1003 = vsel %vm1002, %v996, %v1000
  %s1004 = scalar_lea.vmem [#allocation3], 1
  %v1005 = vld [vmem:[%s1004] ss:$2 sm:$0xf]
  %s1006 = scalar_lea.vmem [#allocation3], 11
  %v1007 = vld [vmem:[%s1006] ss:$2 sm:$0xf]
  %v1009 = vrot.slane %v1007, 4
  %v1011 = vsel %vm1002, %v1005, %v1009
  %s1012 = scalar_lea.vmem [#allocation3], 2
  %v1013 = vld [vmem:[%s1012] ss:$2 sm:$0xf]
  %s1014 = scalar_lea.vmem [#allocation3], 12
  %v1015 = vld [vmem:[%s1014] ss:$2 sm:$0xf]
  %v1017 = vrot.slane %v1015, 4
  %v1019 = vsel %vm1002, %v1013, %v1017
  %s1020 = scalar_lea.vmem [#allocation3], 3
  %v1021 = vld [vmem:[%s1020] ss:$2 sm:$0xf]
  %s1022 = scalar_lea.vmem [#allocation3], 13
  %v1023 = vld [vmem:[%s1022] ss:$2 sm:$0xf]
  %v1025 = vrot.slane %v1023, 4
  %v1027 = vsel %vm1002, %v1021, %v1025
  %v1028 = vpack.c.bf16 %v1003, %v1003
  %v1029 = vpack.c.bf16 %v1011, %v1011
  %v1030 = vpack.c.bf16 %v1019, %v1019
  %v1031 = vpack.c.bf16 %v1027, %v1027
  %v1032 = vld [vmem:[%s7] sm:$0xf]
  %v1033 = vld [vmem:[%s7 + $0x4] sm:$0xf]
  %v1034 = vld [vmem:[%s7 + $0x8] sm:$0xf]
  %v1035 = vld [vmem:[%s7 + $0xc] sm:$0xf]
  %v1036 = vld [vmem:[%s7 + $0x10] sm:$0xf]
  %v1037 = vld [vmem:[%s7 + $0x14] sm:$0xf]
  %v1038 = vld [vmem:[%s7 + $0x18] sm:$0xf]
  %v1039 = vld [vmem:[%s7 + $0x1c] sm:$0xf]
  %v1040 = vld [vmem:[%s7 + $0x20] sm:$0xf]
  %v1041 = vld [vmem:[%s7 + $0x24] sm:$0xf]
  %v1042 = vld [vmem:[%s7 + $0x28] sm:$0xf]
  %v1043 = vld [vmem:[%s7 + $0x2c] sm:$0xf]
  %v1044 = vld [vmem:[%s7 + $0x30] sm:$0xf]
  %v1045 = vld [vmem:[%s7 + $0x34] sm:$0xf]
  %v1046 = vld [vmem:[%s7 + $0x38] sm:$0xf]
  %v1047 = vld [vmem:[%s7 + $0x3c] sm:$0xf]
  %v1048 = vld [vmem:[%s7 + $0x40] sm:$0xf]
  %v1049 = vld [vmem:[%s7 + $0x44] sm:$0xf]
  %v1050 = vld [vmem:[%s7 + $0x48] sm:$0xf]
  %v1051 = vld [vmem:[%s7 + $0x4c] sm:$0xf]
  %v1052 = vld [vmem:[%s7 + $0x50] sm:$0xf]
  %v1053 = vld [vmem:[%s7 + $0x54] sm:$0xf]
  %v1054 = vld [vmem:[%s7 + $0x58] sm:$0xf]
  %v1055 = vld [vmem:[%s7 + $0x5c] sm:$0xf]
  %v1056 = vld [vmem:[%s7 + $0x60] sm:$0xf]
  %v1057 = vld [vmem:[%s7 + $0x64] sm:$0xf]
  %v1058 = vld [vmem:[%s7 + $0x68] sm:$0xf]
  %v1059 = vld [vmem:[%s7 + $0x6c] sm:$0xf]
  %v1060 = vld [vmem:[%s7 + $0x70] sm:$0xf]
  %v1061 = vld [vmem:[%s7 + $0x74] sm:$0xf]
  %v1062 = vld [vmem:[%s7 + $0x78] sm:$0xf]
  %v1063 = vld [vmem:[%s7 + $0x7c] sm:$0xf]
  %v1064 = vld [vmem:[%s7 + $0x80] sm:$0xf]
  %v1065 = vld [vmem:[%s7 + $0x84] sm:$0xf]
  %v1066 = vld [vmem:[%s7 + $0x88] sm:$0xf]
  %v1067 = vld [vmem:[%s7 + $0x8c] sm:$0xf]
  %v1068 = vld [vmem:[%s7 + $0x90] sm:$0xf]
  %v1069 = vld [vmem:[%s7 + $0x94] sm:$0xf]
  %v1070 = vld [vmem:[%s7 + $0x98] sm:$0xf]
  %v1071 = vld [vmem:[%s7 + $0x9c] sm:$0xf]
  %v1072 = vld [vmem:[%s7 + $0xa0] sm:$0xf]
  %v1073 = vld [vmem:[%s7 + $0xa4] sm:$0xf]
  %v1074 = vld [vmem:[%s7 + $0xa8] sm:$0xf]
  %v1075 = vld [vmem:[%s7 + $0xac] sm:$0xf]
  %v1076 = vld [vmem:[%s7 + $0xb0] sm:$0xf]
  %v1077 = vld [vmem:[%s7 + $0xb4] sm:$0xf]
  %v1078 = vld [vmem:[%s7 + $0xb8] sm:$0xf]
  %v1079 = vld [vmem:[%s7 + $0xbc] sm:$0xf]
  %v1080 = vld [vmem:[%s7 + $0xc0] sm:$0xf]
  %v1081 = vld [vmem:[%s7 + $0xc4] sm:$0xf]
  %v1082 = vld [vmem:[%s7 + $0xc8] sm:$0xf]
  %v1083 = vld [vmem:[%s7 + $0xcc] sm:$0xf]
  %v1084 = vld [vmem:[%s7 + $0xd0] sm:$0xf]
  %v1085 = vld [vmem:[%s7 + $0xd4] sm:$0xf]
  %v1086 = vld [vmem:[%s7 + $0xd8] sm:$0xf]
  %v1087 = vld [vmem:[%s7 + $0xdc] sm:$0xf]
  %v1088 = vld [vmem:[%s7 + $0xe0] sm:$0xf]
  %v1089 = vld [vmem:[%s7 + $0xe4] sm:$0xf]
  %v1090 = vld [vmem:[%s7 + $0xe8] sm:$0xf]
  %v1091 = vld [vmem:[%s7 + $0xec] sm:$0xf]
  %v1092 = vld [vmem:[%s7 + $0xf0] sm:$0xf]
  %v1093 = vld [vmem:[%s7 + $0xf4] sm:$0xf]
  %v1094 = vld [vmem:[%s7 + $0xf8] sm:$0xf]
  %v1095 = vld [vmem:[%s7 + $0xfc] sm:$0xf]
  %v1160 = vunpack.c.l.b16 %v1032
  %v1161 = vunpack.c.l.b16 %v1033
  %v1162 = vunpack.c.l.b16 %v1034
  %v1163 = vunpack.c.l.b16 %v1035
  %v1164 = vunpack.c.l.b16 %v1036
  %v1165 = vunpack.c.l.b16 %v1037
  %v1166 = vunpack.c.l.b16 %v1038
  %v1167 = vunpack.c.l.b16 %v1039
  %v1168 = vunpack.c.l.b16 %v1040
  %v1169 = vunpack.c.l.b16 %v1041
  %v1170 = vunpack.c.l.b16 %v1042
  %v1171 = vunpack.c.l.b16 %v1043
  %v1172 = vunpack.c.l.b16 %v1044
  %v1173 = vunpack.c.l.b16 %v1045
  %v1174 = vunpack.c.l.b16 %v1046
  %v1175 = vunpack.c.l.b16 %v1047
  %v1176 = vunpack.c.l.b16 %v1048
  %v1177 = vunpack.c.l.b16 %v1049
  %v1178 = vunpack.c.l.b16 %v1050
  %v1179 = vunpack.c.l.b16 %v1051
  %v1180 = vunpack.c.l.b16 %v1052
  %v1181 = vunpack.c.l.b16 %v1053
  %v1182 = vunpack.c.l.b16 %v1054
  %v1183 = vunpack.c.l.b16 %v1055
  %v1184 = vunpack.c.l.b16 %v1056
  %v1185 = vunpack.c.l.b16 %v1057
  %v1186 = vunpack.c.l.b16 %v1058
  %v1187 = vunpack.c.l.b16 %v1059
  %v1188 = vunpack.c.l.b16 %v1060
  %v1189 = vunpack.c.l.b16 %v1061
  %v1190 = vunpack.c.l.b16 %v1062
  %v1191 = vunpack.c.l.b16 %v1063
  %v1192 = vunpack.c.l.b16 %v1064
  %v1193 = vunpack.c.l.b16 %v1065
  %v1194 = vunpack.c.l.b16 %v1066
  %v1195 = vunpack.c.l.b16 %v1067
  %v1196 = vunpack.c.l.b16 %v1068
  %v1197 = vunpack.c.l.b16 %v1069
  %v1198 = vunpack.c.l.b16 %v1070
  %v1199 = vunpack.c.l.b16 %v1071
  %v1200 = vunpack.c.l.b16 %v1072
  %v1201 = vunpack.c.l.b16 %v1073
  %v1202 = vunpack.c.l.b16 %v1074
  %v1203 = vunpack.c.l.b16 %v1075
  %v1204 = vunpack.c.l.b16 %v1076
  %v1205 = vunpack.c.l.b16 %v1077
  %v1206 = vunpack.c.l.b16 %v1078
  %v1207 = vunpack.c.l.b16 %v1079
  %v1208 = vunpack.c.l.b16 %v1080
  %v1209 = vunpack.c.l.b16 %v1081
  %v1210 = vunpack.c.l.b16 %v1082
  %v1211 = vunpack.c.l.b16 %v1083
  %v1212 = vunpack.c.l.b16 %v1084
  %v1213 = vunpack.c.l.b16 %v1085
  %v1214 = vunpack.c.l.b16 %v1086
  %v1215 = vunpack.c.l.b16 %v1087
  %v1216 = vunpack.c.l.b16 %v1088
  %v1217 = vunpack.c.l.b16 %v1089
  %v1218 = vunpack.c.l.b16 %v1090
  %v1219 = vunpack.c.l.b16 %v1091
  %v1220 = vunpack.c.l.b16 %v1092
  %v1221 = vunpack.c.l.b16 %v1093
  %v1222 = vunpack.c.l.b16 %v1094
  %v1223 = vunpack.c.l.b16 %v1095
  %v1224 = vpack.c.b16 %v1161, %v1160
  %v1225 = vpack.c.b16 %v1163, %v1162
  %v1226 = vpack.c.b16 %v1165, %v1164
  %v1227 = vpack.c.b16 %v1167, %v1166
  %v1228 = vpack.c.b16 %v1169, %v1168
  %v1229 = vpack.c.b16 %v1171, %v1170
  %v1230 = vpack.c.b16 %v1173, %v1172
  %v1231 = vpack.c.b16 %v1175, %v1174
  %v1232 = vpack.c.b16 %v1177, %v1176
  %v1233 = vpack.c.b16 %v1179, %v1178
  %v1234 = vpack.c.b16 %v1181, %v1180
  %v1235 = vpack.c.b16 %v1183, %v1182
  %v1236 = vpack.c.b16 %v1185, %v1184
  %v1237 = vpack.c.b16 %v1187, %v1186
  %v1238 = vpack.c.b16 %v1189, %v1188
  %v1239 = vpack.c.b16 %v1191, %v1190
  %v1240 = vpack.c.b16 %v1193, %v1192
  %v1241 = vpack.c.b16 %v1195, %v1194
  %v1242 = vpack.c.b16 %v1197, %v1196
  %v1243 = vpack.c.b16 %v1199, %v1198
  %v1244 = vpack.c.b16 %v1201, %v1200
  %v1245 = vpack.c.b16 %v1203, %v1202
  %v1246 = vpack.c.b16 %v1205, %v1204
  %v1247 = vpack.c.b16 %v1207, %v1206
  %v1248 = vpack.c.b16 %v1209, %v1208
  %v1249 = vpack.c.b16 %v1211, %v1210
  %v1250 = vpack.c.b16 %v1213, %v1212
  %v1251 = vpack.c.b16 %v1215, %v1214
  %v1252 = vpack.c.b16 %v1217, %v1216
  %v1253 = vpack.c.b16 %v1219, %v1218
  %v1254 = vpack.c.b16 %v1221, %v1220
  %v1255 = vpack.c.b16 %v1223, %v1222
  %1288 = vmatprep.subr.bf16.mxu0 0
  %1289 = vmatpush1.bf16.msra.mxu0 %v1224
  %1290 = vmatprep.subr.bf16.mxu0 0
  %1291 = vmatpush1.bf16.msra.mxu0 %v1225
  %1292 = vmatprep.subr.bf16.mxu0 0
  %1293 = vmatpush1.bf16.msra.mxu0 %v1226
  %1294 = vmatprep.subr.bf16.mxu0 0
  %1295 = vmatpush1.bf16.msra.mxu0 %v1227
  %1296 = vmatprep.subr.bf16.mxu0 0
  %1297 = vmatpush1.bf16.msra.mxu0 %v1228
  %1298 = vmatprep.subr.bf16.mxu0 0
  %1299 = vmatpush1.bf16.msra.mxu0 %v1229
  %1300 = vmatprep.subr.bf16.mxu0 0
  %1301 = vmatpush1.bf16.msra.mxu0 %v1230
  %1302 = vmatprep.subr.bf16.mxu0 0
  %1303 = vmatpush1.bf16.msra.mxu0 %v1231
  %1304 = vmatprep.subr.bf16.mxu0 0
  %1305 = vmatpush1.bf16.msra.mxu0 %v1232
  %1306 = vmatprep.subr.bf16.mxu0 0
  %1307 = vmatpush1.bf16.msra.mxu0 %v1233
  %1308 = vmatprep.subr.bf16.mxu0 0
  %1309 = vmatpush1.bf16.msra.mxu0 %v1234
  %1310 = vmatprep.subr.bf16.mxu0 0
  %1311 = vmatpush1.bf16.msra.mxu0 %v1235
  %1312 = vmatprep.subr.bf16.mxu0 0
  %1313 = vmatpush1.bf16.msra.mxu0 %v1236
  %1314 = vmatprep.subr.bf16.mxu0 0
  %1315 = vmatpush1.bf16.msra.mxu0 %v1237
  %1316 = vmatprep.subr.bf16.mxu0 0
  %1317 = vmatpush1.bf16.msra.mxu0 %v1238
  %1318 = vmatprep.subr.bf16.mxu0 0
  %1319 = vmatpush1.bf16.msra.mxu0 %v1239
  %1320 = vmatprep.mubr.bf16.mxu0 %v1029
  %1321 = vmatmul.mubr.bf16.gmra.mrb[0].mxu0 %v1028
  %v1322 = vpop.f32.mrb[0].mxu0
  %v1323 = vadd.f32 0.0, %v1322
  %v1324 = vpop.f32.mrb[0].mxu0
  %v1325 = vpop.f32.mrb[0].mxu0
  %v1326 = vpop.f32.mrb[0].mxu0
  %1327 = vdwg.mxu0
  %1328 = vmatprep.subr.bf16.mxu0 0
  %1329 = vmatpush1.bf16.msra.mxu0 %v1240
  %1330 = vmatprep.subr.bf16.mxu0 0
  %1331 = vmatpush1.bf16.msra.mxu0 %v1241
  %1332 = vmatprep.subr.bf16.mxu0 0
  %1333 = vmatpush1.bf16.msra.mxu0 %v1242
  %1334 = vmatprep.subr.bf16.mxu0 0
  %1335 = vmatpush1.bf16.msra.mxu0 %v1243
  %1336 = vmatprep.subr.bf16.mxu0 0
  %1337 = vmatpush1.bf16.msra.mxu0 %v1244
  %1338 = vmatprep.subr.bf16.mxu0 0
  %1339 = vmatpush1.bf16.msra.mxu0 %v1245
  %1340 = vmatprep.subr.bf16.mxu0 0
  %1341 = vmatpush1.bf16.msra.mxu0 %v1246
  %1342 = vmatprep.subr.bf16.mxu0 0
  %1343 = vmatpush1.bf16.msra.mxu0 %v1247
  %1344 = vmatprep.subr.bf16.mxu0 0
  %1345 = vmatpush1.bf16.msra.mxu0 %v1248
  %1346 = vmatprep.subr.bf16.mxu0 0
  %1347 = vmatpush1.bf16.msra.mxu0 %v1249
  %1348 = vmatprep.subr.bf16.mxu0 0
  %1349 = vmatpush1.bf16.msra.mxu0 %v1250
  %1350 = vmatprep.subr.bf16.mxu0 0
  %1351 = vmatpush1.bf16.msra.mxu0 %v1251
  %1352 = vmatprep.subr.bf16.mxu0 0
  %1353 = vmatpush1.bf16.msra.mxu0 %v1252
  %1354 = vmatprep.subr.bf16.mxu0 0
  %1355 = vmatpush1.bf16.msra.mxu0 %v1253
  %1356 = vmatprep.subr.bf16.mxu0 0
  %1357 = vmatpush1.bf16.msra.mxu0 %v1254
  %1358 = vmatprep.subr.bf16.mxu0 0
  %1359 = vmatpush1.bf16.msra.mxu0 %v1255
  %1360 = vmatprep.mubr.bf16.mxu0 %v1031
  %1361 = vmatmul.mubr.bf16.gmra.mrb[0].mxu0 %v1030
  %v1362 = vpop.f32.mrb[0].mxu0
  %v1363 = vadd.f32 %v1323, %v1362
  %v1364 = vpop.f32.mrb[0].mxu0
  %v1365 = vpop.f32.mrb[0].mxu0
  %v1366 = vpop.f32.mrb[0].mxu0
  %1367 = vdwg.mxu0
  %v1368 = vrot.slane %v1363, 4
  %v1369 = vadd.f32 %v1363, %v1368
  %v1370 = vrot.slane %v1369, 2
  %v1371 = vadd.f32 %v1369, %v1370
  %v1372 = vrot.slane %v1371, 1
  %v1373 = vadd.f32 %v1371, %v1372
  %v1374 = vmul.f32 %v1363, %v1363
  %v1375 = vrot.slane %v1374, 4
  %v1376 = vadd.f32 %v1374, %v1375
  %v1377 = vrot.slane %v1376, 2
  %v1378 = vadd.f32 %v1376, %v1377
  %v1379 = vrot.slane %v1378, 1
  %v1380 = vadd.f32 %v1378, %v1379
  %v1381 = vsel %vm469, %v1373, %v1380
  %1382 = vrot.lane.b32.xlu0 %v1381, 32
  %v1383 = vpop.permute.xlu0 %1382
  %v1384 = vadd.f32 %v1381, %v1383
  %1385 = vrot.lane.b32.xlu0 %v1384, 64
  %v1386 = vpop.permute.xlu0 %1385
  %v1387 = vadd.f32 %v1384, %v1386
  %v1388 = vmul.f32 %v1387, 0.03125
  %v1389 = vmul.f32 %v1388, %v1388
  %v1391 = vrot.slane %v1389, 7
  %v1393 = vsub.f32 %v1388, %v1391
  %v1394 = vmax.f32 %v1393, 0.0
  %v1395 = vld [vmem:[%s8] sm:$0x1]
  %v1396 = vadd.f32 %v1394, 1e-05
  %v1397 = vrsqrt.pop %v1396
  %v1400 = vunpack.c.l.s4 1966171168
  %v1401 = vunpack.c.0.s8 %v1400
  %v1402 = vlaneseq
  %v1403 = vshrl.u32 %v1402, 7
  %v1404 = vsub.s32 %v1401, %v1403
  %v1405 = vrot.slane %v1397, %v1404
  %v1406 = vcombine.high %v1405, %v1405
  %v1408 = vunpack.c.l.s4 1966171168
  %v1409 = vunpack.c.0.s8 %v1408
  %v1410 = vlaneseq
  %v1411 = vshrl.u32 %v1410, 7
  %v1412 = vsub.s32 %v1409, %v1411
  %v1413 = vrot.slane %v1406, %v1412
  %v1415 = vmul.f32 %v1395, %v1413
  %v1416 = vld [vmem:[%s9] sm:$0x1]
  %v1417 = vmul.f32 %v1388, %v1415
  %v1418 = vsub.f32 %v1416, %v1417
  %v1420 = vlaneseq
  %v1421 = vshrl.u32 %v1420, 7
  %v1422 = vsub.s32 0, %v1421
  %v1423 = vrot.slane %v1415, %v1422
  %v1425 = vmul.f32 %v1363, %v1423
  %v1427 = vlaneseq
  %v1428 = vshrl.u32 %v1427, 7
  %v1429 = vsub.s32 0, %v1428
  %v1430 = vrot.slane %v1418, %v1429
  %v1432 = vadd.f32 %v1425, %v1430
  %vm1433 = vcmp.gt.f32.partialorder %v1432, 0.0
  %v1434 = vmul.f32 %v1432, 0.2
  %v1435 = vsel %vm1433, %v1432, %v1434
  %1436 = vst [vmem:[#allocation4] sm:$0xff] 0.0
  %1437 = vst [vmem:[#allocation4 + $0x8] sm:$0xf] 0.0
  %1438 = vst [vmem:[#allocation4 + $0x1] sm:$0xf] %v1435
  %1439 = vst [vmem:[#allocation4 + $0x3] sm:$0xf0] %v1435
  %v1440 = vld [vmem:[#allocation4] ss:$2 sm:$0x3]
  %s1441 = scalar_lea.vmem [#allocation4], 6
  %v1442 = vld [vmem:[%s1441] ss:$2 sm:$0x3]
  %v1444 = vrot.slane %v1442, 6
  %vm1446 = vcmask 1041408
  %v1447 = vsel %vm1446, %v1440, %v1444
  %s1448 = scalar_lea.vmem [#allocation4], 1
  %v1449 = vld [vmem:[%s1448] ss:$2 sm:$0x3]
  %s1450 = scalar_lea.vmem [#allocation4], 7
  %v1451 = vld [vmem:[%s1450] ss:$2 sm:$0x3]
  %v1453 = vrot.slane %v1451, 6
  %v1455 = vsel %vm1446, %v1449, %v1453
  %s1456 = scalar_lea.vmem [#allocation4], 2
  %v1457 = vld [vmem:[%s1456] ss:$2 sm:$0x3]
  %s1458 = scalar_lea.vmem [#allocation4], 8
  %v1459 = vld [vmem:[%s1458] ss:$2 sm:$0x3]
  %v1461 = vrot.slane %v1459, 6
  %v1463 = vsel %vm1446, %v1457, %v1461
  %s1464 = scalar_lea.vmem [#allocation4], 3
  %v1465 = vld [vmem:[%s1464] ss:$2 sm:$0x3]
  %s1466 = scalar_lea.vmem [#allocation4], 9
  %v1467 = vld [vmem:[%s1466] ss:$2 sm:$0x3]
  %v1469 = vrot.slane %v1467, 6
  %v1471 = vsel %vm1446, %v1465, %v1469
  %v1472 = vpack.c.bf16 %v1447, %v1447
  %v1473 = vpack.c.bf16 %v1455, %v1455
  %v1474 = vpack.c.bf16 %v1463, %v1463
  %v1475 = vpack.c.bf16 %v1471, %v1471
  %v1476 = vld [vmem:[%s10] sm:$0xf]
  %v1477 = vld [vmem:[%s10 + $0x4] sm:$0xf]
  %v1478 = vld [vmem:[%s10 + $0x8] sm:$0xf]
  %v1479 = vld [vmem:[%s10 + $0xc] sm:$0xf]
  %v1480 = vld [vmem:[%s10 + $0x10] sm:$0xf]
  %v1481 = vld [vmem:[%s10 + $0x14] sm:$0xf]
  %v1482 = vld [vmem:[%s10 + $0x18] sm:$0xf]
  %v1483 = vld [vmem:[%s10 + $0x1c] sm:$0xf]
  %v1484 = vld [vmem:[%s10 + $0x20] sm:$0xf]
  %v1485 = vld [vmem:[%s10 + $0x24] sm:$0xf]
  %v1486 = vld [vmem:[%s10 + $0x28] sm:$0xf]
  %v1487 = vld [vmem:[%s10 + $0x2c] sm:$0xf]
  %v1488 = vld [vmem:[%s10 + $0x30] sm:$0xf]
  %v1489 = vld [vmem:[%s10 + $0x34] sm:$0xf]
  %v1490 = vld [vmem:[%s10 + $0x38] sm:$0xf]
  %v1491 = vld [vmem:[%s10 + $0x3c] sm:$0xf]
  %v1492 = vld [vmem:[%s10 + $0x40] sm:$0xf]
  %v1493 = vld [vmem:[%s10 + $0x44] sm:$0xf]
  %v1494 = vld [vmem:[%s10 + $0x48] sm:$0xf]
  %v1495 = vld [vmem:[%s10 + $0x4c] sm:$0xf]
  %v1496 = vld [vmem:[%s10 + $0x50] sm:$0xf]
  %v1497 = vld [vmem:[%s10 + $0x54] sm:$0xf]
  %v1498 = vld [vmem:[%s10 + $0x58] sm:$0xf]
  %v1499 = vld [vmem:[%s10 + $0x5c] sm:$0xf]
  %v1500 = vld [vmem:[%s10 + $0x60] sm:$0xf]
  %v1501 = vld [vmem:[%s10 + $0x64] sm:$0xf]
  %v1502 = vld [vmem:[%s10 + $0x68] sm:$0xf]
  %v1503 = vld [vmem:[%s10 + $0x6c] sm:$0xf]
  %v1504 = vld [vmem:[%s10 + $0x70] sm:$0xf]
  %v1505 = vld [vmem:[%s10 + $0x74] sm:$0xf]
  %v1506 = vld [vmem:[%s10 + $0x78] sm:$0xf]
  %v1507 = vld [vmem:[%s10 + $0x7c] sm:$0xf]
  %v1508 = vld [vmem:[%s10 + $0x80] sm:$0xf]
  %v1509 = vld [vmem:[%s10 + $0x84] sm:$0xf]
  %v1510 = vld [vmem:[%s10 + $0x88] sm:$0xf]
  %v1511 = vld [vmem:[%s10 + $0x8c] sm:$0xf]
  %v1512 = vld [vmem:[%s10 + $0x90] sm:$0xf]
  %v1513 = vld [vmem:[%s10 + $0x94] sm:$0xf]
  %v1514 = vld [vmem:[%s10 + $0x98] sm:$0xf]
  %v1515 = vld [vmem:[%s10 + $0x9c] sm:$0xf]
  %v1516 = vld [vmem:[%s10 + $0xa0] sm:$0xf]
  %v1517 = vld [vmem:[%s10 + $0xa4] sm:$0xf]
  %v1518 = vld [vmem:[%s10 + $0xa8] sm:$0xf]
  %v1519 = vld [vmem:[%s10 + $0xac] sm:$0xf]
  %v1520 = vld [vmem:[%s10 + $0xb0] sm:$0xf]
  %v1521 = vld [vmem:[%s10 + $0xb4] sm:$0xf]
  %v1522 = vld [vmem:[%s10 + $0xb8] sm:$0xf]
  %v1523 = vld [vmem:[%s10 + $0xbc] sm:$0xf]
  %v1524 = vld [vmem:[%s10 + $0xc0] sm:$0xf]
  %v1525 = vld [vmem:[%s10 + $0xc4] sm:$0xf]
  %v1526 = vld [vmem:[%s10 + $0xc8] sm:$0xf]
  %v1527 = vld [vmem:[%s10 + $0xcc] sm:$0xf]
  %v1528 = vld [vmem:[%s10 + $0xd0] sm:$0xf]
  %v1529 = vld [vmem:[%s10 + $0xd4] sm:$0xf]
  %v1530 = vld [vmem:[%s10 + $0xd8] sm:$0xf]
  %v1531 = vld [vmem:[%s10 + $0xdc] sm:$0xf]
  %v1532 = vld [vmem:[%s10 + $0xe0] sm:$0xf]
  %v1533 = vld [vmem:[%s10 + $0xe4] sm:$0xf]
  %v1534 = vld [vmem:[%s10 + $0xe8] sm:$0xf]
  %v1535 = vld [vmem:[%s10 + $0xec] sm:$0xf]
  %v1536 = vld [vmem:[%s10 + $0xf0] sm:$0xf]
  %v1537 = vld [vmem:[%s10 + $0xf4] sm:$0xf]
  %v1538 = vld [vmem:[%s10 + $0xf8] sm:$0xf]
  %v1539 = vld [vmem:[%s10 + $0xfc] sm:$0xf]
  %v1604 = vunpack.c.l.b16 %v1476
  %v1605 = vunpack.c.l.b16 %v1477
  %v1606 = vunpack.c.l.b16 %v1478
  %v1607 = vunpack.c.l.b16 %v1479
  %v1608 = vunpack.c.l.b16 %v1480
  %v1609 = vunpack.c.l.b16 %v1481
  %v1610 = vunpack.c.l.b16 %v1482
  %v1611 = vunpack.c.l.b16 %v1483
  %v1612 = vunpack.c.l.b16 %v1484
  %v1613 = vunpack.c.l.b16 %v1485
  %v1614 = vunpack.c.l.b16 %v1486
  %v1615 = vunpack.c.l.b16 %v1487
  %v1616 = vunpack.c.l.b16 %v1488
  %v1617 = vunpack.c.l.b16 %v1489
  %v1618 = vunpack.c.l.b16 %v1490
  %v1619 = vunpack.c.l.b16 %v1491
  %v1620 = vunpack.c.l.b16 %v1492
  %v1621 = vunpack.c.l.b16 %v1493
  %v1622 = vunpack.c.l.b16 %v1494
  %v1623 = vunpack.c.l.b16 %v1495
  %v1624 = vunpack.c.l.b16 %v1496
  %v1625 = vunpack.c.l.b16 %v1497
  %v1626 = vunpack.c.l.b16 %v1498
  %v1627 = vunpack.c.l.b16 %v1499
  %v1628 = vunpack.c.l.b16 %v1500
  %v1629 = vunpack.c.l.b16 %v1501
  %v1630 = vunpack.c.l.b16 %v1502
  %v1631 = vunpack.c.l.b16 %v1503
  %v1632 = vunpack.c.l.b16 %v1504
  %v1633 = vunpack.c.l.b16 %v1505
  %v1634 = vunpack.c.l.b16 %v1506
  %v1635 = vunpack.c.l.b16 %v1507
  %v1636 = vunpack.c.l.b16 %v1508
  %v1637 = vunpack.c.l.b16 %v1509
  %v1638 = vunpack.c.l.b16 %v1510
  %v1639 = vunpack.c.l.b16 %v1511
  %v1640 = vunpack.c.l.b16 %v1512
  %v1641 = vunpack.c.l.b16 %v1513
  %v1642 = vunpack.c.l.b16 %v1514
  %v1643 = vunpack.c.l.b16 %v1515
  %v1644 = vunpack.c.l.b16 %v1516
  %v1645 = vunpack.c.l.b16 %v1517
  %v1646 = vunpack.c.l.b16 %v1518
  %v1647 = vunpack.c.l.b16 %v1519
  %v1648 = vunpack.c.l.b16 %v1520
  %v1649 = vunpack.c.l.b16 %v1521
  %v1650 = vunpack.c.l.b16 %v1522
  %v1651 = vunpack.c.l.b16 %v1523
  %v1652 = vunpack.c.l.b16 %v1524
  %v1653 = vunpack.c.l.b16 %v1525
  %v1654 = vunpack.c.l.b16 %v1526
  %v1655 = vunpack.c.l.b16 %v1527
  %v1656 = vunpack.c.l.b16 %v1528
  %v1657 = vunpack.c.l.b16 %v1529
  %v1658 = vunpack.c.l.b16 %v1530
  %v1659 = vunpack.c.l.b16 %v1531
  %v1660 = vunpack.c.l.b16 %v1532
  %v1661 = vunpack.c.l.b16 %v1533
  %v1662 = vunpack.c.l.b16 %v1534
  %v1663 = vunpack.c.l.b16 %v1535
  %v1664 = vunpack.c.l.b16 %v1536
  %v1665 = vunpack.c.l.b16 %v1537
  %v1666 = vunpack.c.l.b16 %v1538
  %v1667 = vunpack.c.l.b16 %v1539
  %v1668 = vpack.c.b16 %v1605, %v1604
  %v1669 = vpack.c.b16 %v1607, %v1606
  %v1670 = vpack.c.b16 %v1609, %v1608
  %v1671 = vpack.c.b16 %v1611, %v1610
  %v1672 = vpack.c.b16 %v1613, %v1612
  %v1673 = vpack.c.b16 %v1615, %v1614
  %v1674 = vpack.c.b16 %v1617, %v1616
  %v1675 = vpack.c.b16 %v1619, %v1618
  %v1676 = vpack.c.b16 %v1621, %v1620
  %v1677 = vpack.c.b16 %v1623, %v1622
  %v1678 = vpack.c.b16 %v1625, %v1624
  %v1679 = vpack.c.b16 %v1627, %v1626
  %v1680 = vpack.c.b16 %v1629, %v1628
  %v1681 = vpack.c.b16 %v1631, %v1630
  %v1682 = vpack.c.b16 %v1633, %v1632
  %v1683 = vpack.c.b16 %v1635, %v1634
  %v1684 = vpack.c.b16 %v1637, %v1636
  %v1685 = vpack.c.b16 %v1639, %v1638
  %v1686 = vpack.c.b16 %v1641, %v1640
  %v1687 = vpack.c.b16 %v1643, %v1642
  %v1688 = vpack.c.b16 %v1645, %v1644
  %v1689 = vpack.c.b16 %v1647, %v1646
  %v1690 = vpack.c.b16 %v1649, %v1648
  %v1691 = vpack.c.b16 %v1651, %v1650
  %v1692 = vpack.c.b16 %v1653, %v1652
  %v1693 = vpack.c.b16 %v1655, %v1654
  %v1694 = vpack.c.b16 %v1657, %v1656
  %v1695 = vpack.c.b16 %v1659, %v1658
  %v1696 = vpack.c.b16 %v1661, %v1660
  %v1697 = vpack.c.b16 %v1663, %v1662
  %v1698 = vpack.c.b16 %v1665, %v1664
  %v1699 = vpack.c.b16 %v1667, %v1666
  %1732 = vmatprep.subr.bf16.mxu0 0
  %1733 = vmatpush1.bf16.msra.mxu0 %v1668
  %1734 = vmatprep.subr.bf16.mxu0 0
  %1735 = vmatpush1.bf16.msra.mxu0 %v1669
  %1736 = vmatprep.subr.bf16.mxu0 0
  %1737 = vmatpush1.bf16.msra.mxu0 %v1670
  %1738 = vmatprep.subr.bf16.mxu0 0
  %1739 = vmatpush1.bf16.msra.mxu0 %v1671
  %1740 = vmatprep.subr.bf16.mxu0 0
  %1741 = vmatpush1.bf16.msra.mxu0 %v1672
  %1742 = vmatprep.subr.bf16.mxu0 0
  %1743 = vmatpush1.bf16.msra.mxu0 %v1673
  %1744 = vmatprep.subr.bf16.mxu0 0
  %1745 = vmatpush1.bf16.msra.mxu0 %v1674
  %1746 = vmatprep.subr.bf16.mxu0 0
  %1747 = vmatpush1.bf16.msra.mxu0 %v1675
  %1748 = vmatprep.subr.bf16.mxu0 0
  %1749 = vmatpush1.bf16.msra.mxu0 %v1676
  %1750 = vmatprep.subr.bf16.mxu0 0
  %1751 = vmatpush1.bf16.msra.mxu0 %v1677
  %1752 = vmatprep.subr.bf16.mxu0 0
  %1753 = vmatpush1.bf16.msra.mxu0 %v1678
  %1754 = vmatprep.subr.bf16.mxu0 0
  %1755 = vmatpush1.bf16.msra.mxu0 %v1679
  %1756 = vmatprep.subr.bf16.mxu0 0
  %1757 = vmatpush1.bf16.msra.mxu0 %v1680
  %1758 = vmatprep.subr.bf16.mxu0 0
  %1759 = vmatpush1.bf16.msra.mxu0 %v1681
  %1760 = vmatprep.subr.bf16.mxu0 0
  %1761 = vmatpush1.bf16.msra.mxu0 %v1682
  %1762 = vmatprep.subr.bf16.mxu0 0
  %1763 = vmatpush1.bf16.msra.mxu0 %v1683
  %1764 = vmatprep.mubr.bf16.mxu0 %v1473
  %1765 = vmatmul.mubr.bf16.gmra.mrb[0].mxu0 %v1472
  %v1766 = vpop.f32.mrb[0].mxu0
  %v1767 = vadd.f32 0.0, %v1766
  %v1768 = vpop.f32.mrb[0].mxu0
  %v1769 = vpop.f32.mrb[0].mxu0
  %v1770 = vpop.f32.mrb[0].mxu0
  %1771 = vdwg.mxu0
  %1772 = vmatprep.subr.bf16.mxu0 0
  %1773 = vmatpush1.bf16.msra.mxu0 %v1684
  %1774 = vmatprep.subr.bf16.mxu0 0
  %1775 = vmatpush1.bf16.msra.mxu0 %v1685
  %1776 = vmatprep.subr.bf16.mxu0 0
  %1777 = vmatpush1.bf16.msra.mxu0 %v1686
  %1778 = vmatprep.subr.bf16.mxu0 0
  %1779 = vmatpush1.bf16.msra.mxu0 %v1687
  %1780 = vmatprep.subr.bf16.mxu0 0
  %1781 = vmatpush1.bf16.msra.mxu0 %v1688
  %1782 = vmatprep.subr.bf16.mxu0 0
  %1783 = vmatpush1.bf16.msra.mxu0 %v1689
  %1784 = vmatprep.subr.bf16.mxu0 0
  %1785 = vmatpush1.bf16.msra.mxu0 %v1690
  %1786 = vmatprep.subr.bf16.mxu0 0
  %1787 = vmatpush1.bf16.msra.mxu0 %v1691
  %1788 = vmatprep.subr.bf16.mxu0 0
  %1789 = vmatpush1.bf16.msra.mxu0 %v1692
  %1790 = vmatprep.subr.bf16.mxu0 0
  %1791 = vmatpush1.bf16.msra.mxu0 %v1693
  %1792 = vmatprep.subr.bf16.mxu0 0
  %1793 = vmatpush1.bf16.msra.mxu0 %v1694
  %1794 = vmatprep.subr.bf16.mxu0 0
  %1795 = vmatpush1.bf16.msra.mxu0 %v1695
  %1796 = vmatprep.subr.bf16.mxu0 0
  %1797 = vmatpush1.bf16.msra.mxu0 %v1696
  %1798 = vmatprep.subr.bf16.mxu0 0
  %1799 = vmatpush1.bf16.msra.mxu0 %v1697
  %1800 = vmatprep.subr.bf16.mxu0 0
  %1801 = vmatpush1.bf16.msra.mxu0 %v1698
  %1802 = vmatprep.subr.bf16.mxu0 0
  %1803 = vmatpush1.bf16.msra.mxu0 %v1699
  %1804 = vmatprep.mubr.bf16.mxu0 %v1475
  %1805 = vmatmul.mubr.bf16.gmra.mrb[0].mxu0 %v1474
  %v1806 = vpop.f32.mrb[0].mxu0
  %v1807 = vadd.f32 %v1767, %v1806
  %v1808 = vpop.f32.mrb[0].mxu0
  %v1809 = vpop.f32.mrb[0].mxu0
  %v1810 = vpop.f32.mrb[0].mxu0
  %1811 = vdwg.mxu0
  %v1812 = vsel %vm1002, %v1807, 0.0
  %v1813 = vrot.slane %v1812, 4
  %v1814 = vadd.f32 %v1812, %v1813
  %v1815 = vrot.slane %v1814, 2
  %v1816 = vadd.f32 %v1814, %v1815
  %v1817 = vrot.slane %v1816, 1
  %v1818 = vadd.f32 %v1816, %v1817
  %v1819 = vmul.f32 %v1807, %v1807
  %v1820 = vsel %vm1002, %v1819, 0.0
  %v1821 = vrot.slane %v1820, 4
  %v1822 = vadd.f32 %v1820, %v1821
  %v1823 = vrot.slane %v1822, 2
  %v1824 = vadd.f32 %v1822, %v1823
  %v1825 = vrot.slane %v1824, 1
  %v1826 = vadd.f32 %v1824, %v1825
  %v1827 = vsel %vm469, %v1818, %v1826
  %1828 = vrot.lane.b32.xlu0 %v1827, 64
  %v1829 = vpop.permute.xlu0 %1828
  %v1830 = vadd.f32 %v1827, %v1829
  %v1831 = vmul.f32 %v1830, 0.125
  %v1832 = vmul.f32 %v1831, %v1831
  %v1834 = vrot.slane %v1832, 7
  %v1836 = vsub.f32 %v1831, %v1834
  %v1837 = vmax.f32 %v1836, 0.0
  %v1838 = vld [vmem:[%s11] sm:$0x1]
  %v1839 = vadd.f32 %v1837, 1e-05
  %v1840 = vrsqrt.pop %v1839
  %v1843 = vunpack.c.l.s4 1966171168
  %v1844 = vunpack.c.0.s8 %v1843
  %v1845 = vlaneseq
  %v1846 = vshrl.u32 %v1845, 7
  %v1847 = vsub.s32 %v1844, %v1846
  %v1848 = vrot.slane %v1840, %v1847
  %v1849 = vcombine.high %v1848, %v1848
  %v1851 = vunpack.c.l.s4 1966171168
  %v1852 = vunpack.c.0.s8 %v1851
  %v1853 = vlaneseq
  %v1854 = vshrl.u32 %v1853, 7
  %v1855 = vsub.s32 %v1852, %v1854
  %v1856 = vrot.slane %v1849, %v1855
  %v1858 = vmul.f32 %v1838, %v1856
  %v1859 = vld [vmem:[%s12] sm:$0x1]
  %v1860 = vmul.f32 %v1831, %v1858
  %v1861 = vsub.f32 %v1859, %v1860
  %v1863 = vlaneseq
  %v1864 = vshrl.u32 %v1863, 7
  %v1865 = vsub.s32 0, %v1864
  %v1866 = vrot.slane %v1858, %v1865
  %v1868 = vmul.f32 %v1807, %v1866
  %v1870 = vlaneseq
  %v1871 = vshrl.u32 %v1870, 7
  %v1872 = vsub.s32 0, %v1871
  %v1873 = vrot.slane %v1861, %v1872
  %v1875 = vadd.f32 %v1868, %v1873
  %vm1876 = vcmp.gt.f32.partialorder %v1875, 0.0
  %v1877 = vmul.f32 %v1875, 0.2
  %v1878 = vsel %vm1876, %v1875, %v1877
  %v1880 = vrot.slane %v1878, 1
  %v1882 = vrot.slane %v1880, 1
  %v1884 = vsel %vm469, %v1878, %v1880
  %v1885 = vsel %vm469, %v1880, %v1882
  %v1886 = vpack.c.bf16 %v1884, %v1884
  %v1887 = vpack.c.bf16 %v1885, %v1885
  %v1888 = vld [vmem:[%s13] sm:$0xf]
  %v1889 = vld [vmem:[%s13 + $0x4] sm:$0xf]
  %v1890 = vld [vmem:[%s13 + $0x8] sm:$0xf]
  %v1891 = vld [vmem:[%s13 + $0xc] sm:$0xf]
  %v1892 = vld [vmem:[%s13 + $0x10] sm:$0xf]
  %v1893 = vld [vmem:[%s13 + $0x14] sm:$0xf]
  %v1894 = vld [vmem:[%s13 + $0x18] sm:$0xf]
  %v1895 = vld [vmem:[%s13 + $0x1c] sm:$0xf]
  %v1896 = vld [vmem:[%s13 + $0x20] sm:$0xf]
  %v1897 = vld [vmem:[%s13 + $0x24] sm:$0xf]
  %v1898 = vld [vmem:[%s13 + $0x28] sm:$0xf]
  %v1899 = vld [vmem:[%s13 + $0x2c] sm:$0xf]
  %v1900 = vld [vmem:[%s13 + $0x30] sm:$0xf]
  %v1901 = vld [vmem:[%s13 + $0x34] sm:$0xf]
  %v1902 = vld [vmem:[%s13 + $0x38] sm:$0xf]
  %v1903 = vld [vmem:[%s13 + $0x3c] sm:$0xf]
  %v1904 = vld [vmem:[%s13 + $0x40] sm:$0xf]
  %v1905 = vld [vmem:[%s13 + $0x44] sm:$0xf]
  %v1906 = vld [vmem:[%s13 + $0x48] sm:$0xf]
  %v1907 = vld [vmem:[%s13 + $0x4c] sm:$0xf]
  %v1908 = vld [vmem:[%s13 + $0x50] sm:$0xf]
  %v1909 = vld [vmem:[%s13 + $0x54] sm:$0xf]
  %v1910 = vld [vmem:[%s13 + $0x58] sm:$0xf]
  %v1911 = vld [vmem:[%s13 + $0x5c] sm:$0xf]
  %v1912 = vld [vmem:[%s13 + $0x60] sm:$0xf]
  %v1913 = vld [vmem:[%s13 + $0x64] sm:$0xf]
  %v1914 = vld [vmem:[%s13 + $0x68] sm:$0xf]
  %v1915 = vld [vmem:[%s13 + $0x6c] sm:$0xf]
  %v1916 = vld [vmem:[%s13 + $0x70] sm:$0xf]
  %v1917 = vld [vmem:[%s13 + $0x74] sm:$0xf]
  %v1918 = vld [vmem:[%s13 + $0x78] sm:$0xf]
  %v1919 = vld [vmem:[%s13 + $0x7c] sm:$0xf]
  %v1920 = vld [vmem:[%s14] sm:$0x1]
  %v1922 = vlaneseq
  %v1923 = vshrl.u32 %v1922, 7
  %v1924 = vsub.s32 0, %v1923
  %v1925 = vrot.slane %v1920, %v1924
  %v1959 = vunpack.c.l.b16 %v1888
  %v1960 = vunpack.c.l.b16 %v1889
  %v1961 = vunpack.c.l.b16 %v1890
  %v1962 = vunpack.c.l.b16 %v1891
  %v1963 = vunpack.c.l.b16 %v1892
  %v1964 = vunpack.c.l.b16 %v1893
  %v1965 = vunpack.c.l.b16 %v1894
  %v1966 = vunpack.c.l.b16 %v1895
  %v1967 = vunpack.c.l.b16 %v1896
  %v1968 = vunpack.c.l.b16 %v1897
  %v1969 = vunpack.c.l.b16 %v1898
  %v1970 = vunpack.c.l.b16 %v1899
  %v1971 = vunpack.c.l.b16 %v1900
  %v1972 = vunpack.c.l.b16 %v1901
  %v1973 = vunpack.c.l.b16 %v1902
  %v1974 = vunpack.c.l.b16 %v1903
  %v1975 = vunpack.c.l.b16 %v1904
  %v1976 = vunpack.c.l.b16 %v1905
  %v1977 = vunpack.c.l.b16 %v1906
  %v1978 = vunpack.c.l.b16 %v1907
  %v1979 = vunpack.c.l.b16 %v1908
  %v1980 = vunpack.c.l.b16 %v1909
  %v1981 = vunpack.c.l.b16 %v1910
  %v1982 = vunpack.c.l.b16 %v1911
  %v1983 = vunpack.c.l.b16 %v1912
  %v1984 = vunpack.c.l.b16 %v1913
  %v1985 = vunpack.c.l.b16 %v1914
  %v1986 = vunpack.c.l.b16 %v1915
  %v1987 = vunpack.c.l.b16 %v1916
  %v1988 = vunpack.c.l.b16 %v1917
  %v1989 = vunpack.c.l.b16 %v1918
  %v1990 = vunpack.c.l.b16 %v1919
  %v1991 = vpack.c.b16 %v1960, %v1959
  %v1992 = vpack.c.b16 %v1962, %v1961
  %v1993 = vpack.c.b16 %v1964, %v1963
  %v1994 = vpack.c.b16 %v1966, %v1965
  %v1995 = vpack.c.b16 %v1968, %v1967
  %v1996 = vpack.c.b16 %v1970, %v1969
  %v1997 = vpack.c.b16 %v1972, %v1971
  %v1998 = vpack.c.b16 %v1974, %v1973
  %v1999 = vpack.c.b16 %v1976, %v1975
  %v2000 = vpack.c.b16 %v1978, %v1977
  %v2001 = vpack.c.b16 %v1980, %v1979
  %v2002 = vpack.c.b16 %v1982, %v1981
  %v2003 = vpack.c.b16 %v1984, %v1983
  %v2004 = vpack.c.b16 %v1986, %v1985
  %v2005 = vpack.c.b16 %v1988, %v1987
  %v2006 = vpack.c.b16 %v1990, %v1989
  %2023 = vmatprep.subr.bf16.mxu0 0
  %2024 = vmatpush1.bf16.msra.mxu0 %v1991
  %2025 = vmatprep.subr.bf16.mxu0 0
  %2026 = vmatpush1.bf16.msra.mxu0 %v1992
  %2027 = vmatprep.subr.bf16.mxu0 0
  %2028 = vmatpush1.bf16.msra.mxu0 %v1993
  %2029 = vmatprep.subr.bf16.mxu0 0
  %2030 = vmatpush1.bf16.msra.mxu0 %v1994
  %2031 = vmatprep.subr.bf16.mxu0 0
  %2032 = vmatpush1.bf16.msra.mxu0 %v1995
  %2033 = vmatprep.subr.bf16.mxu0 0
  %2034 = vmatpush1.bf16.msra.mxu0 %v1996
  %2035 = vmatprep.subr.bf16.mxu0 0
  %2036 = vmatpush1.bf16.msra.mxu0 %v1997
  %2037 = vmatprep.subr.bf16.mxu0 0
  %2038 = vmatpush1.bf16.msra.mxu0 %v1998
  %2039 = vmatprep.subr.bf16.mxu0 0
  %2040 = vmatpush1.bf16.msra.mxu0 %v1999
  %2041 = vmatprep.subr.bf16.mxu0 0
  %2042 = vmatpush1.bf16.msra.mxu0 %v2000
  %2043 = vmatprep.subr.bf16.mxu0 0
  %2044 = vmatpush1.bf16.msra.mxu0 %v2001
  %2045 = vmatprep.subr.bf16.mxu0 0
  %2046 = vmatpush1.bf16.msra.mxu0 %v2002
  %2047 = vmatprep.subr.bf16.mxu0 0
  %2048 = vmatpush1.bf16.msra.mxu0 %v2003
  %2049 = vmatprep.subr.bf16.mxu0 0
  %2050 = vmatpush1.bf16.msra.mxu0 %v2004
  %2051 = vmatprep.subr.bf16.mxu0 0
  %2052 = vmatpush1.bf16.msra.mxu0 %v2005
  %2053 = vmatprep.subr.bf16.mxu0 0
  %2054 = vmatpush1.bf16.msra.mxu0 %v2006
  %2055 = vmatprep.mubr.bf16.mxu0 %v1887
  %2056 = vmatmul.mubr.bf16.gmra.mrb[0].mxu0 %v1886
  %v2057 = vpop.f32.mrb[0].mxu0
  %v2058 = vadd.f32 %v1925, %v2057
  %v2059 = vpop.f32.mrb[0].mxu0
  %v2060 = vpop.f32.mrb[0].mxu0
  %v2061 = vpop.f32.mrb[0].mxu0
  %2062 = vdwg.mxu0
  %v2063 = vlaneseq
  %v2064 = vand.u32 %v2063, 127
  %v2065 = vld [vmem:[%s15] sm:$0x3]
  %2066 = vset.pattern.permute.xlu0 0
  %2067 = vperm.xlu0 %2066, %v2065
  %v2068 = vpop.permute.xlu0 %2067
  %vm2069 = vcmp.eq.s32.totalorder %v2064, %v2068
  %v2070 = vsel %vm2069, %v2058, 0.0
  %vm2071 = vcmask 25600
  %v2072 = vsel %vm2071, %v2070, 0.0
  %2073 = vadd.xlane.f32.xlu0 %v2072
  %v2074 = vpop.xlane.xlu0 %2073
  %vm2075 = vcmask 1024
  %2076 = vst.msk [vmem:[%s16] sm:$0x3] %vm2075, %v2074
  // Predicated region
  $region66: #{discriminator_forward.1} parent=0 // pred_check
    _
  $region67: #{discriminator_forward.1} parent=0 // pred_check_branch
    %2078 = sbr.rel (0) target = $region69
  $region68: #{discriminator_forward.1} parent=0 // pred_region
    _
  $region69: #{discriminator_forward.1} parent=0 // pred_fallthru
    _
  // Predicated region
  $region70: #{discriminator_forward.1} parent=0 // pred_check
    _
  $region71: #{discriminator_forward.1} parent=0 // pred_check_branch
    %2080 = sbr.rel (0) target = $region73
  $region72: #{discriminator_forward.1} parent=0 // pred_region
    _
  $region73: #{discriminator_forward.1} parent=0 // pred_fallthru
    _

</llo_original>
